<compile_context>
chip_gen: v7x
topology: tpu7x:2x2x1
jax: 0.10.0
libtpu: 0.0.40
codegen_flags: <defaults>
</compile_context>

<pallas_src>
import functools

import jax
import jax.numpy as jnp
import numpy as np
from jax import lax
from jax.experimental import pallas as pl
from jax.experimental.pallas import tpu as pltpu


def _bottleneck_kernel(H, W, Cin, P,
                       x_ref, w1_ref, w2_ref, w3_ref, b1_ref, b2_ref, b3_ref,
                       o_ref):
    """One batch element per grid step.

    x_ref : (1, H, W, Cin) f32   input tile (Cin == 4*P, also the residual)
    w1    : (Cin, P)       bf16  1x1 conv (BN1 scale folded in)
    w2    : (9*P, P)       bf16  3x3 conv as im2col matmul (BN2 scale folded)
    w3    : (P, 4*P)       bf16  1x1 conv (BN3 scale folded in)
    b*    : (1, C)         f32   folded BN biases
    """
    x = x_ref[0]                                   # (H, W, Cin) f32
    x2d = x.reshape(H * W, Cin)

    # ---- conv1 (1x1) + bias + relu ------------------------------------
    t1 = jnp.dot(x2d.astype(jnp.bfloat16), w1_ref[...],
                 preferred_element_type=jnp.float32)
    t1 = jnp.maximum(t1 + b1_ref[...], 0.0)        # (H*W, P) f32

    # ---- conv2 (3x3, stride 1, SAME) as ONE im2col matmul -------------
    # Zero-pad along H by concatenation on the (cheap) leading axis; realize
    # the three W shifts once each at the value level instead of nine
    # sublane-unaligned window slices; stack the 9 taps along the lane axis
    # so the MXU sees a single K = 9P contraction.
    t1hw = t1.reshape(H, W, P)
    zrow = jnp.zeros((1, W, P), jnp.float32)
    tp = jnp.concatenate([zrow, t1hw, zrow], axis=0)          # (H+2, W, P)
    zcol = jnp.zeros((H + 2, 1, P), jnp.float32)
    slab3 = jnp.concatenate(
        [jnp.concatenate([zcol, tp[:, :W - 1, :]], axis=1),   # input col w-1
         tp,                                                  # input col w
         jnp.concatenate([tp[:, 1:, :], zcol], axis=1)],      # input col w+1
        axis=-1)                                              # (H+2, W, 3P)
    cols = jnp.concatenate([slab3[dy:dy + H] for dy in range(3)],
                           axis=-1)                           # (H, W, 9P)
    cols = cols.reshape(H * W, 9 * P).astype(jnp.bfloat16)
    t2 = jnp.dot(cols, w2_ref[...], preferred_element_type=jnp.float32)
    t2 = jnp.maximum(t2 + b2_ref[...], 0.0)        # (H*W, P) f32

    # ---- conv3 (1x1) + bias + residual add + relu ----------------------
    t3 = jnp.dot(t2.astype(jnp.bfloat16), w3_ref[...],
                 preferred_element_type=jnp.float32)
    out = jnp.maximum(t3 + b3_ref[...] + x2d, 0.0)            # (H*W, 4P) f32
    o_ref[0] = out.reshape(H, W, Cin)


def bottleneck_forward(x_nchw, params):
    """x_nchw: (N, Cin, H, W) f32 with Cin == 4*planes (stride=1, downsample=None)."""
    w1, w2, w3, b1, b2, b3 = params            # weights bf16 (BN-folded), biases f32
    N, Cin, H, W = x_nchw.shape
    P = w1.shape[1]
    assert Cin == 4 * P, "downsample=None requires inplanes == planes * 4"
    assert W % 8 == 0, "W must be a multiple of 8 for layout-free reshapes"

    x = jnp.transpose(x_nchw, (0, 2, 3, 1))    # NCHW -> NHWC
    kernel = functools.partial(_bottleneck_kernel, H, W, Cin, P)

    out = pl.pallas_call(
        kernel,
        out_shape=jax.ShapeDtypeStruct((N, H, W, Cin), jnp.float32),
        grid_spec=pltpu.PrefetchScalarGridSpec(
            num_scalar_prefetch=0,
            grid=(N,),
            in_specs=[
                pl.BlockSpec((1, H, W, Cin), lambda n: (n, 0, 0, 0)),  # x
                pl.BlockSpec((Cin, P), lambda n: (0, 0)),              # w1 (folded)
                pl.BlockSpec((9 * P, P), lambda n: (0, 0)),            # w2 im2col
                pl.BlockSpec((P, 4 * P), lambda n: (0, 0)),            # w3 (folded)
                pl.BlockSpec((1, P), lambda n: (0, 0)),                # b1
                pl.BlockSpec((1, P), lambda n: (0, 0)),                # b2
                pl.BlockSpec((1, 4 * P), lambda n: (0, 0)),            # b3
            ],
            out_specs=pl.BlockSpec((1, H, W, Cin), lambda n: (n, 0, 0, 0)),
        ),
        compiler_params=pltpu.CompilerParams(
            # batch iterations are independent -> shard across TensorCores (v7x)
            dimension_semantics=("parallel",),
            # explicit budget (raise for real ResNet stage shapes)
            vmem_limit_bytes=32 * 1024 * 1024,
        ),
    )(x, w1, w2, w3, b1, b2, b3)

    return jnp.transpose(out, (0, 3, 1, 2))    # NHWC -> NCHW


if __name__ == "__main__":
    key = jax.random.PRNGKey(0)
    N, planes = 2, 32
    inplanes = planes * 4          # 128: lane-dense channels; required (downsample=None)
    H = W = 16
    ks = jax.random.split(key, 7)

    x = jax.random.normal(ks[0], (N, inplanes, H, W), jnp.float32)

    # PyTorch-shaped conv weights (OIHW), deterministic synthetic init.
    w1_oihw = 0.1 * jax.random.normal(ks[1], (planes, inplanes, 1, 1), jnp.float32)
    w2_oihw = 0.1 * jax.random.normal(ks[2], (planes, planes, 3, 3), jnp.float32)
    w3_oihw = 0.1 * jax.random.normal(ks[3], (planes * 4, planes, 1, 1), jnp.float32)

    def bn_params(k, c):
        kg, kb, km, kv = jax.random.split(k, 4)
        gamma = 1.0 + 0.1 * jax.random.normal(kg, (c,), jnp.float32)
        beta = 0.1 * jax.random.normal(kb, (c,), jnp.float32)
        mean = 0.1 * jax.random.normal(km, (c,), jnp.float32)
        var = jnp.abs(jax.random.normal(kv, (c,), jnp.float32)) + 0.5
        return gamma, beta, mean, var

    eps = 1e-5

    def fold(gamma, beta, mean, var):
        s = gamma / jnp.sqrt(var + eps)
        return s, beta - mean * s

    s1, b1 = fold(*bn_params(ks[4], planes))
    s2, b2 = fold(*bn_params(ks[5], planes))
    s3, b3 = fold(*bn_params(ks[6], planes * 4))

    # Matmul-friendly layouts with the BN scale folded into the conv weights.
    w1f = jnp.transpose(w1_oihw[:, :, 0, 0], (1, 0)) * s1[None, :]              # (Cin, P)
    w2_hwio = jnp.transpose(w2_oihw, (2, 3, 1, 0)) * s2[None, None, None, :]    # (3,3,P,P)
    w2f = w2_hwio.reshape(9 * planes, planes)                                   # (9P, P)
    w3f = jnp.transpose(w3_oihw[:, :, 0, 0], (1, 0)) * s3[None, :]              # (P, 4P)

    params = (w1f.astype(jnp.bfloat16),
              w2f.astype(jnp.bfloat16),
              w3f.astype(jnp.bfloat16),
              b1[None, :], b2[None, :], b3[None, :])

    out = jax.block_until_ready(bottleneck_forward(x, params))

    # Pure-JAX f32 reference (same inference-mode folded BN).
    xn = jnp.transpose(x, (0, 2, 3, 1))
    dn = ('NHWC', 'HWIO', 'NHWC')
    t = lax.conv_general_dilated(xn, w1f.reshape(1, 1, inplanes, planes),
                                 (1, 1), 'SAME', dimension_numbers=dn)
    t = jnp.maximum(t + b1, 0.0)
    t = lax.conv_general_dilated(t, w2_hwio, (1, 1), 'SAME', dimension_numbers=dn)
    t = jnp.maximum(t + b2, 0.0)
    t = lax.conv_general_dilated(t, w3f.reshape(1, 1, planes, planes * 4),
                                 (1, 1), 'SAME', dimension_numbers=dn)
    ref = jnp.transpose(jnp.maximum(t + b3 + xn, 0.0), (0, 3, 1, 2))

    # bf16 matmul operands (f32 accumulation) -> loosened tolerance.
    np.testing.assert_allclose(np.asarray(out), np.asarray(ref),
                               rtol=5e-2, atol=5e-2)
    print("KERNEL_OK")
</pallas_src>

<mosaic_0001>
module attributes {stable_mosaic.version = 11 : i64} {
  func.func @_bottleneck_kernel(%arg0: i32, %arg1: memref<1x16x16x128xf32, #tpu.memory_space<vmem>>, %arg2: memref<128x32xbf16, #tpu.memory_space<vmem>>, %arg3: memref<288x32xbf16, #tpu.memory_space<vmem>>, %arg4: memref<32x128xbf16, #tpu.memory_space<vmem>>, %arg5: memref<1x32xf32, #tpu.memory_space<vmem>>, %arg6: memref<1x32xf32, #tpu.memory_space<vmem>>, %arg7: memref<1x128xf32, #tpu.memory_space<vmem>>, %arg8: memref<1x16x16x128xf32, #tpu.memory_space<vmem>>) attributes {dimension_semantics = [#tpu.dimension_semantics<parallel>], iteration_bounds = array<i64: 2>, scalar_prefetch = 0 : i64, scratch_operands = 0 : i64, tpu.core_type = #tpu.core_type<tc>, window_params = [{transform_indices = @transform_0, window_bounds = array<i64: 1, 16, 16, 128>}, {pipeline_mode = #tpu.pipeline_mode<synchronous>, transform_indices = @transform_1, window_bounds = array<i64: 128, 32>}, {pipeline_mode = #tpu.pipeline_mode<synchronous>, transform_indices = @transform_2, window_bounds = array<i64: 288, 32>}, {pipeline_mode = #tpu.pipeline_mode<synchronous>, transform_indices = @transform_3, window_bounds = array<i64: 32, 128>}, {pipeline_mode = #tpu.pipeline_mode<synchronous>, transform_indices = @transform_4, window_bounds = array<i64: 1, 32>}, {pipeline_mode = #tpu.pipeline_mode<synchronous>, transform_indices = @transform_5, window_bounds = array<i64: 1, 32>}, {pipeline_mode = #tpu.pipeline_mode<synchronous>, transform_indices = @transform_6, window_bounds = array<i64: 1, 128>}, {transform_indices = @transform_7, window_bounds = array<i64: 1, 16, 16, 128>}]} {
    %c0 = arith.constant 0 : index
    %c0_0 = arith.constant 0 : index
    %c0_1 = arith.constant 0 : index
    %c0_2 = arith.constant 0 : index
    %0 = vector.load %arg1[%c0, %c0_0, %c0_1, %c0_2] : memref<1x16x16x128xf32, #tpu.memory_space<vmem>>, vector<1x16x16x128xf32>
    %1 = vector.shape_cast %0 : vector<1x16x16x128xf32> to vector<16x16x128xf32>
    %2 = vector.shape_cast %1 : vector<16x16x128xf32> to vector<256x128xf32>
    %3 = arith.truncf %2 : vector<256x128xf32> to vector<256x128xbf16>
    %c0_3 = arith.constant 0 : index
    %c0_4 = arith.constant 0 : index
    %4 = vector.load %arg2[%c0_3, %c0_4] : memref<128x32xbf16, #tpu.memory_space<vmem>>, vector<128x32xbf16>
    %cst = arith.constant dense<0.000000e+00> : vector<256x32xf32>
    %5 = tpu.matmul %3, %4, %cst {dimension_numbers = #tpu.dot_dimension_numbers<[1], [0], [0], [1], [0, 0, 1, 1], [], []>} : vector<256x128xbf16>, vector<128x32xbf16>, vector<256x32xf32> -> vector<256x32xf32>
    %c0_5 = arith.constant 0 : index
    %c0_6 = arith.constant 0 : index
    %6 = vector.load %arg5[%c0_5, %c0_6] : memref<1x32xf32, #tpu.memory_space<vmem>>, vector<1x32xf32>
    %7 = vector.broadcast %6 : vector<1x32xf32> to vector<256x32xf32>
    %8 = arith.addf %5, %7 : vector<256x32xf32>
    %cst_7 = arith.constant 0.000000e+00 : f32
    %9 = vector.broadcast %cst_7 : f32 to vector<256x32xf32>
    %10 = arith.maximumf %8, %9 : vector<256x32xf32>
    %11 = vector.shape_cast %10 : vector<256x32xf32> to vector<16x16x32xf32>
    %cst_8 = arith.constant 0.000000e+00 : f32
    %12 = vector.broadcast %cst_8 : f32 to vector<1x16x32xf32>
    %13 = tpu.concatenate %12, %11, %12 in 0 : vector<1x16x32xf32>, vector<16x16x32xf32>, vector<1x16x32xf32> -> vector<18x16x32xf32>
    %cst_9 = arith.constant 0.000000e+00 : f32
    %14 = vector.broadcast %cst_9 : f32 to vector<18x1x32xf32>
    %15 = vector.extract_strided_slice %13 {offsets = [0, 0, 0], sizes = [18, 15, 32], strides = [1, 1, 1]} : vector<18x16x32xf32> to vector<18x15x32xf32>
    %16 = tpu.concatenate %14, %15 in 1 : vector<18x1x32xf32>, vector<18x15x32xf32> -> vector<18x16x32xf32>
    %17 = vector.extract_strided_slice %13 {offsets = [0, 1, 0], sizes = [18, 15, 32], strides = [1, 1, 1]} : vector<18x16x32xf32> to vector<18x15x32xf32>
    %18 = tpu.concatenate %17, %14 in 1 : vector<18x15x32xf32>, vector<18x1x32xf32> -> vector<18x16x32xf32>
    %19 = tpu.concatenate %16, %13, %18 in 2 : vector<18x16x32xf32>, vector<18x16x32xf32>, vector<18x16x32xf32> -> vector<18x16x96xf32>
    %20 = vector.extract_strided_slice %19 {offsets = [0, 0, 0], sizes = [16, 16, 96], strides = [1, 1, 1]} : vector<18x16x96xf32> to vector<16x16x96xf32>
    %21 = vector.extract_strided_slice %19 {offsets = [1, 0, 0], sizes = [16, 16, 96], strides = [1, 1, 1]} : vector<18x16x96xf32> to vector<16x16x96xf32>
    %22 = vector.extract_strided_slice %19 {offsets = [2, 0, 0], sizes = [16, 16, 96], strides = [1, 1, 1]} : vector<18x16x96xf32> to vector<16x16x96xf32>
    %23 = tpu.concatenate %20, %21, %22 in 2 : vector<16x16x96xf32>, vector<16x16x96xf32>, vector<16x16x96xf32> -> vector<16x16x288xf32>
    %24 = vector.shape_cast %23 : vector<16x16x288xf32> to vector<256x288xf32>
    %25 = arith.truncf %24 : vector<256x288xf32> to vector<256x288xbf16>
    %c0_10 = arith.constant 0 : index
    %c0_11 = arith.constant 0 : index
    %26 = vector.load %arg3[%c0_10, %c0_11] : memref<288x32xbf16, #tpu.memory_space<vmem>>, vector<288x32xbf16>
    %cst_12 = arith.constant dense<0.000000e+00> : vector<256x32xf32>
    %27 = tpu.matmul %25, %26, %cst_12 {dimension_numbers = #tpu.dot_dimension_numbers<[1], [0], [0], [1], [0, 0, 1, 1], [], []>} : vector<256x288xbf16>, vector<288x32xbf16>, vector<256x32xf32> -> vector<256x32xf32>
    %c0_13 = arith.constant 0 : index
    %c0_14 = arith.constant 0 : index
    %28 = vector.load %arg6[%c0_13, %c0_14] : memref<1x32xf32, #tpu.memory_space<vmem>>, vector<1x32xf32>
    %29 = vector.broadcast %28 : vector<1x32xf32> to vector<256x32xf32>
    %30 = arith.addf %27, %29 : vector<256x32xf32>
    %cst_15 = arith.constant 0.000000e+00 : f32
    %31 = vector.broadcast %cst_15 : f32 to vector<256x32xf32>
    %32 = arith.maximumf %30, %31 : vector<256x32xf32>
    %33 = arith.truncf %32 : vector<256x32xf32> to vector<256x32xbf16>
    %c0_16 = arith.constant 0 : index
    %c0_17 = arith.constant 0 : index
    %34 = vector.load %arg4[%c0_16, %c0_17] : memref<32x128xbf16, #tpu.memory_space<vmem>>, vector<32x128xbf16>
    %cst_18 = arith.constant dense<0.000000e+00> : vector<256x128xf32>
    %35 = tpu.matmul %33, %34, %cst_18 {dimension_numbers = #tpu.dot_dimension_numbers<[1], [0], [0], [1], [0, 0, 1, 1], [], []>} : vector<256x32xbf16>, vector<32x128xbf16>, vector<256x128xf32> -> vector<256x128xf32>
    %c0_19 = arith.constant 0 : index
    %c0_20 = arith.constant 0 : index
    %36 = vector.load %arg7[%c0_19, %c0_20] : memref<1x128xf32, #tpu.memory_space<vmem>>, vector<1x128xf32>
    %37 = vector.broadcast %36 : vector<1x128xf32> to vector<256x128xf32>
    %38 = arith.addf %35, %37 : vector<256x128xf32>
    %39 = arith.addf %38, %2 : vector<256x128xf32>
    %cst_21 = arith.constant 0.000000e+00 : f32
    %40 = vector.broadcast %cst_21 : f32 to vector<256x128xf32>
    %41 = arith.maximumf %39, %40 : vector<256x128xf32>
    %42 = vector.shape_cast %41 : vector<256x128xf32> to vector<16x16x128xf32>
    %c0_22 = arith.constant 0 : index
    %c0_23 = arith.constant 0 : index
    %c0_24 = arith.constant 0 : index
    %c0_25 = arith.constant 0 : index
    %43 = vector.load %arg8[%c0_22, %c0_23, %c0_24, %c0_25] : memref<1x16x16x128xf32, #tpu.memory_space<vmem>>, vector<1x16x16x128xf32>
    %44 = vector.shape_cast %43 : vector<1x16x16x128xf32> to vector<16x16x128xf32>
    %45 = vector.shape_cast %42 : vector<16x16x128xf32> to vector<1x16x16x128xf32>
    tpu.vector_store %arg8[%c0_22, %c0_23, %c0_24, %c0_25], %45 {strides = array<i32>} : memref<1x16x16x128xf32, #tpu.memory_space<vmem>>, vector<1x16x16x128xf32>,
    return
  }
  func.func @transform_0(%arg0: i32) -> (i32, i32, i32, i32) {
    %c0_i32 = arith.constant 0 : i32
    %c0_i32_0 = arith.constant 0 : i32
    %c0_i32_1 = arith.constant 0 : i32
    %c0_i32_2 = arith.constant 0 : i32
    return %arg0, %c0_i32, %c0_i32_0, %c0_i32_1 : i32, i32, i32, i32
  }
  func.func @transform_1(%arg0: i32) -> (i32, i32) {
    %c0_i32 = arith.constant 0 : i32
    %c0_i32_0 = arith.constant 0 : i32
    %c0_i32_1 = arith.constant 0 : i32
    return %c0_i32, %c0_i32_0 : i32, i32
  }
  func.func @transform_2(%arg0: i32) -> (i32, i32) {
    %c0_i32 = arith.constant 0 : i32
    %c0_i32_0 = arith.constant 0 : i32
    %c0_i32_1 = arith.constant 0 : i32
    return %c0_i32, %c0_i32_0 : i32, i32
  }
  func.func @transform_3(%arg0: i32) -> (i32, i32) {
    %c0_i32 = arith.constant 0 : i32
    %c0_i32_0 = arith.constant 0 : i32
    %c0_i32_1 = arith.constant 0 : i32
    return %c0_i32, %c0_i32_0 : i32, i32
  }
  func.func @transform_4(%arg0: i32) -> (i32, i32) {
    %c0_i32 = arith.constant 0 : i32
    %c0_i32_0 = arith.constant 0 : i32
    %c0_i32_1 = arith.constant 0 : i32
    return %c0_i32, %c0_i32_0 : i32, i32
  }
  func.func @transform_5(%arg0: i32) -> (i32, i32) {
    %c0_i32 = arith.constant 0 : i32
    %c0_i32_0 = arith.constant 0 : i32
    %c0_i32_1 = arith.constant 0 : i32
    return %c0_i32, %c0_i32_0 : i32, i32
  }
  func.func @transform_6(%arg0: i32) -> (i32, i32) {
    %c0_i32 = arith.constant 0 : i32
    %c0_i32_0 = arith.constant 0 : i32
    %c0_i32_1 = arith.constant 0 : i32
    return %c0_i32, %c0_i32_0 : i32, i32
  }
  func.func @transform_7(%arg0: i32) -> (i32, i32, i32, i32) {
    %c0_i32 = arith.constant 0 : i32
    %c0_i32_0 = arith.constant 0 : i32
    %c0_i32_1 = arith.constant 0 : i32
    %c0_i32_2 = arith.constant 0 : i32
    return %arg0, %c0_i32, %c0_i32_0, %c0_i32_1 : i32, i32, i32, i32
  }
}

</mosaic_0001>

<llo_original>
// kernel: tpu_custom_call.1
$region0: #{tpu_custom_call.1}
  #allocation0 [shape = 'u32[]', space=smem, size = 0x4, offset = 0x4, fixed_abs, tag = 'smem constant byte address 0x4 - core index']
  #allocation1 [shape = 'u32[144,128]{1,0:T(1,128)}', space=vmem, size = 0x12000, scoped, tag = 'internal scratch']
  %s0 = inlined_call_operand.hbm [shape: f32[2,16,16,128], index: 0, kind: input, shape index: {}]
  %s1 = inlined_call_operand.vmem [shape: bf16[128,32], index: 1, kind: input, shape index: {}]
  %s2 = inlined_call_operand.vmem [shape: bf16[288,32], index: 2, kind: input, shape index: {}]
  %s3 = inlined_call_operand.vmem [shape: bf16[32,128], index: 3, kind: input, shape index: {}]
  %s4 = inlined_call_operand.vmem [shape: f32[1,32], index: 4, kind: input, shape index: {}]
  %s5 = inlined_call_operand.vmem [shape: f32[1,32], index: 5, kind: input, shape index: {}]
  %s6 = inlined_call_operand.vmem [shape: f32[1,128], index: 6, kind: input, shape index: {}]
  %s7 = inlined_call_operand.hbm [shape: f32[2,16,16,128], index: 7, kind: output, shape index: {}]
  %s8 = sld [smem:[#allocation0]]
  $region65: #{tpu_custom_call.1} parent=0
    _
  %s10 = ssub.s32 1, %s8
  %s11 = scalar_select 0, %s10, %s8
  $region1: #{tpu_custom_call.1} parent=0
    #allocation2 [shape = 'u8[262144]{0}', space=vmem, size = 0x40000, scoped, tag = 'input window, operand 0']
    #allocation3 [shape = 's32[2]{0}', space=sflag, size = 0x8, scoped, tag = 'scoped memory for tpu_custom_call.1']
    #allocation4 [shape = 's32[2]{0}', space=sflag, size = 0x8, scoped, tag = 'scoped memory for tpu_custom_call.1']
    #allocation5 [shape = 'u8[262144]{0}', space=vmem, size = 0x40000, scoped, tag = 'output window, operand 0']
    %12 = vsyncpa [#allocation3], 0
    %s13 = scalar_lea.sflag [#allocation3], 1
    %14 = vsyncpa %s13, 0
    %15 = vsyncpa [#allocation4], 0
    %s16 = scalar_lea.sflag [#allocation4], 1
    %17 = vsyncpa %s16, 0
    loop: start=0, step=1, limit=4
    $region2: #{tpu_custom_call.1} parent=1 // loop_pre_header
      _
    $region3: #{tpu_custom_call.1} parent=1 // loop_header
      %s19 = sphi 0, %s23
      %p20 = scmp.ge.s32.totalorder %s19, 4
      %s29 = sphi 0, %s31
      %s32 = sphi 0, %s29
      %s33 = sphi 0, %s32
      %s49 = sphi 0, %s33
      %s53 = sphi 0, %s53
      %s55 = sphi 0, %s53
      %s56 = sphi 0, %s55
      %s70 = sphi 0, %s56
      %s74 = sphi 0, %s74
      %s76 = sphi 0, %s74
      %s77 = sphi 0, %s76
      %s91 = sphi 0, %s77
      %s95 = sphi 0, %s95
      %s97 = sphi 0, %s95
      %s98 = sphi 0, %s97
      %s112 = sphi 0, %s98
      %s116 = sphi 0, %s116
      %s118 = sphi 0, %s116
      %s119 = sphi 0, %s118
      %s133 = sphi 0, %s119
      %s137 = sphi 0, %s137
      %s139 = sphi 0, %s137
      %s140 = sphi 0, %s139
      %s154 = sphi 0, %s140
      %s158 = sphi 0, %s158
      %s160 = sphi 0, %s158
      %s161 = sphi 0, %s160
      %s175 = sphi 0, %s161
      %s181 = sphi 0, %s183
      %s184 = sphi 0, %s181
      %s185 = sphi 0, %s184
      %s201 = sphi 0, %s185
    $region4: #{tpu_custom_call.1} parent=1 // loop_header_branch
      %22 = sbr.rel (%p20) target = $region8
    $region5: #{tpu_custom_call.1} parent=1 // loop_body
      %s24 = ssub.s32 %s19, 1
      %s25 = ssub.s32 %s19, 2
      %s26 = sadd.s32 %s19, 1
      %s27 = ssub.s32 %s19, %s26
      %p28 = scmp.eq.s32.totalorder %s27, 0
      %s30 = sadd.s32 %s29, 1
      %s31 = scalar_select %p28, %s29, %s30
      %p34 = pneg %p28
      %p35 = scmp.eq.s32.totalorder %s19, 1
      %p36 = por %p34, %p35
      %p37 = scmp.ne.s32.totalorder %s29, %s32
      %p38 = scmp.eq.s32.totalorder %s19, 0
      %p39 = por %p37, %p38
      %p40 = scmp.ne.s32.totalorder %s29, %s32
      %p41 = scmp.eq.s32.totalorder %s24, 1
      %p42 = por %p40, %p41
      %p43 = scmp.ne.s32.totalorder %s32, %s33
      %p44 = scmp.eq.s32.totalorder %s24, 0
      %p45 = por %p43, %p44
      %p46 = scmp.ne.s32.totalorder %s32, %s33
      %p47 = scmp.eq.s32.totalorder %s25, 1
      %p48 = por %p46, %p47
      %p50 = scmp.ne.s32.totalorder %s33, %s49
      %p51 = scmp.eq.s32.totalorder %s25, 0
      %p52 = por %p50, %p51
      %s54 = sadd.s32 %s53, 1
      %p57 = scmp.eq.s32.totalorder %s19, 1
      %p58 = scmp.ne.s32.totalorder %s53, %s55
      %p59 = scmp.eq.s32.totalorder %s19, 0
      %p60 = por %p58, %p59
      %p61 = scmp.ne.s32.totalorder %s53, %s55
      %p62 = scmp.eq.s32.totalorder %s24, 1
      %p63 = por %p61, %p62
      %p64 = scmp.ne.s32.totalorder %s55, %s56
      %p65 = scmp.eq.s32.totalorder %s24, 0
      %p66 = por %p64, %p65
      %p67 = scmp.ne.s32.totalorder %s55, %s56
      %p68 = scmp.eq.s32.totalorder %s25, 1
      %p69 = por %p67, %p68
      %p71 = scmp.ne.s32.totalorder %s56, %s70
      %p72 = scmp.eq.s32.totalorder %s25, 0
      %p73 = por %p71, %p72
      %s75 = sadd.s32 %s74, 1
      %p78 = scmp.eq.s32.totalorder %s19, 1
      %p79 = scmp.ne.s32.totalorder %s74, %s76
      %p80 = scmp.eq.s32.totalorder %s19, 0
      %p81 = por %p79, %p80
      %p82 = scmp.ne.s32.totalorder %s74, %s76
      %p83 = scmp.eq.s32.totalorder %s24, 1
      %p84 = por %p82, %p83
      %p85 = scmp.ne.s32.totalorder %s76, %s77
      %p86 = scmp.eq.s32.totalorder %s24, 0
      %p87 = por %p85, %p86
      %p88 = scmp.ne.s32.totalorder %s76, %s77
      %p89 = scmp.eq.s32.totalorder %s25, 1
      %p90 = por %p88, %p89
      %p92 = scmp.ne.s32.totalorder %s77, %s91
      %p93 = scmp.eq.s32.totalorder %s25, 0
      %p94 = por %p92, %p93
      %s96 = sadd.s32 %s95, 1
      %p99 = scmp.eq.s32.totalorder %s19, 1
      %p100 = scmp.ne.s32.totalorder %s95, %s97
      %p101 = scmp.eq.s32.totalorder %s19, 0
      %p102 = por %p100, %p101
      %p103 = scmp.ne.s32.totalorder %s95, %s97
      %p104 = scmp.eq.s32.totalorder %s24, 1
      %p105 = por %p103, %p104
      %p106 = scmp.ne.s32.totalorder %s97, %s98
      %p107 = scmp.eq.s32.totalorder %s24, 0
      %p108 = por %p106, %p107
      %p109 = scmp.ne.s32.totalorder %s97, %s98
      %p110 = scmp.eq.s32.totalorder %s25, 1
      %p111 = por %p109, %p110
      %p113 = scmp.ne.s32.totalorder %s98, %s112
      %p114 = scmp.eq.s32.totalorder %s25, 0
      %p115 = por %p113, %p114
      %s117 = sadd.s32 %s116, 1
      %p120 = scmp.eq.s32.totalorder %s19, 1
      %p121 = scmp.ne.s32.totalorder %s116, %s118
      %p122 = scmp.eq.s32.totalorder %s19, 0
      %p123 = por %p121, %p122
      %p124 = scmp.ne.s32.totalorder %s116, %s118
      %p125 = scmp.eq.s32.totalorder %s24, 1
      %p126 = por %p124, %p125
      %p127 = scmp.ne.s32.totalorder %s118, %s119
      %p128 = scmp.eq.s32.totalorder %s24, 0
      %p129 = por %p127, %p128
      %p130 = scmp.ne.s32.totalorder %s118, %s119
      %p131 = scmp.eq.s32.totalorder %s25, 1
      %p132 = por %p130, %p131
      %p134 = scmp.ne.s32.totalorder %s119, %s133
      %p135 = scmp.eq.s32.totalorder %s25, 0
      %p136 = por %p134, %p135
      %s138 = sadd.s32 %s137, 1
      %p141 = scmp.eq.s32.totalorder %s19, 1
      %p142 = scmp.ne.s32.totalorder %s137, %s139
      %p143 = scmp.eq.s32.totalorder %s19, 0
      %p144 = por %p142, %p143
      %p145 = scmp.ne.s32.totalorder %s137, %s139
      %p146 = scmp.eq.s32.totalorder %s24, 1
      %p147 = por %p145, %p146
      %p148 = scmp.ne.s32.totalorder %s139, %s140
      %p149 = scmp.eq.s32.totalorder %s24, 0
      %p150 = por %p148, %p149
      %p151 = scmp.ne.s32.totalorder %s139, %s140
      %p152 = scmp.eq.s32.totalorder %s25, 1
      %p153 = por %p151, %p152
      %p155 = scmp.ne.s32.totalorder %s140, %s154
      %p156 = scmp.eq.s32.totalorder %s25, 0
      %p157 = por %p155, %p156
      %s159 = sadd.s32 %s158, 1
      %p162 = scmp.eq.s32.totalorder %s19, 1
      %p163 = scmp.ne.s32.totalorder %s158, %s160
      %p164 = scmp.eq.s32.totalorder %s19, 0
      %p165 = por %p163, %p164
      %p166 = scmp.ne.s32.totalorder %s158, %s160
      %p167 = scmp.eq.s32.totalorder %s24, 1
      %p168 = por %p166, %p167
      %p169 = scmp.ne.s32.totalorder %s160, %s161
      %p170 = scmp.eq.s32.totalorder %s24, 0
      %p171 = por %p169, %p170
      %p172 = scmp.ne.s32.totalorder %s160, %s161
      %p173 = scmp.eq.s32.totalorder %s25, 1
      %p174 = por %p172, %p173
      %p176 = scmp.ne.s32.totalorder %s161, %s175
      %p177 = scmp.eq.s32.totalorder %s25, 0
      %p178 = por %p176, %p177
      %s179 = ssub.s32 %s19, %s26
      %p180 = scmp.eq.s32.totalorder %s179, 0
      %s182 = sadd.s32 %s181, 1
      %s183 = scalar_select %p180, %s181, %s182
      %p186 = pneg %p180
      %p187 = scmp.eq.s32.totalorder %s19, 1
      %p188 = por %p186, %p187
      %p189 = scmp.ne.s32.totalorder %s181, %s184
      %p190 = scmp.eq.s32.totalorder %s19, 0
      %p191 = por %p189, %p190
      %p192 = scmp.ne.s32.totalorder %s181, %s184
      %p193 = scmp.eq.s32.totalorder %s24, 1
      %p194 = por %p192, %p193
      %p195 = scmp.ne.s32.totalorder %s184, %s185
      %p196 = scmp.eq.s32.totalorder %s24, 0
      %p197 = por %p195, %p196
      %p198 = scmp.ne.s32.totalorder %s184, %s185
      %p199 = scmp.eq.s32.totalorder %s25, 1
      %p200 = por %p198, %p199
      %p202 = scmp.ne.s32.totalorder %s185, %s201
      %p203 = scmp.eq.s32.totalorder %s25, 0
      %p204 = por %p202, %p203
      %p205 = scmp.le.s32.totalorder 1, %s19
      %p206 = scmp.lt.s32.totalorder %s19, 3
      %p207 = pnand %p205, %p206
      %p208 = pneg %p207
      // Predicated region
      $region9: #{tpu_custom_call.1} parent=5 // pred_check
        _
      $region10: #{tpu_custom_call.1} parent=5 // pred_check_branch
        %210 = sbr.rel (%p207) target = $region12
      $region11: #{tpu_custom_call.1} parent=5 // pred_region
        %s211 = ssub.s32 %s19, 1
        // Predicated region
        $region13: #{tpu_custom_call.1} parent=11 // pred_check
          %p212 = pneg %p66
        $region14: #{tpu_custom_call.1} parent=11 // pred_check_branch
          %214 = sbr.rel (%p212) target = $region16
        $region15: #{tpu_custom_call.1} parent=11 // pred_region
          _
        $region16: #{tpu_custom_call.1} parent=11 // pred_fallthru
          _
        // Predicated region
        $region17: #{tpu_custom_call.1} parent=11 // pred_check
          %p215 = pneg %p87
        $region18: #{tpu_custom_call.1} parent=11 // pred_check_branch
          %217 = sbr.rel (%p215) target = $region20
        $region19: #{tpu_custom_call.1} parent=11 // pred_region
          _
        $region20: #{tpu_custom_call.1} parent=11 // pred_fallthru
          _
        // Predicated region
        $region21: #{tpu_custom_call.1} parent=11 // pred_check
          %p218 = pneg %p108
        $region22: #{tpu_custom_call.1} parent=11 // pred_check_branch
          %220 = sbr.rel (%p218) target = $region24
        $region23: #{tpu_custom_call.1} parent=11 // pred_region
          _
        $region24: #{tpu_custom_call.1} parent=11 // pred_fallthru
          _
        // Predicated region
        $region25: #{tpu_custom_call.1} parent=11 // pred_check
          %p221 = pneg %p129
        $region26: #{tpu_custom_call.1} parent=11 // pred_check_branch
          %223 = sbr.rel (%p221) target = $region28
        $region27: #{tpu_custom_call.1} parent=11 // pred_region
          _
        $region28: #{tpu_custom_call.1} parent=11 // pred_fallthru
          _
        // Predicated region
        $region29: #{tpu_custom_call.1} parent=11 // pred_check
          %p224 = pneg %p150
        $region30: #{tpu_custom_call.1} parent=11 // pred_check_branch
          %226 = sbr.rel (%p224) target = $region32
        $region31: #{tpu_custom_call.1} parent=11 // pred_region
          _
        $region32: #{tpu_custom_call.1} parent=11 // pred_fallthru
          _
        // Predicated region
        $region33: #{tpu_custom_call.1} parent=11 // pred_check
          %p227 = pneg %p171
        $region34: #{tpu_custom_call.1} parent=11 // pred_check_branch
          %229 = sbr.rel (%p227) target = $region36
        $region35: #{tpu_custom_call.1} parent=11 // pred_region
          _
        $region36: #{tpu_custom_call.1} parent=11 // pred_fallthru
          _
      $region12: #{tpu_custom_call.1} parent=5 // pred_fallthru
        _
      %p230 = scmp.lt.s32.totalorder %s19, 2
      // Predicated region
      $region37: #{tpu_custom_call.1} parent=5 // pred_check
        %p231 = pneg %p230
      $region38: #{tpu_custom_call.1} parent=5 // pred_check_branch
        %233 = sbr.rel (%p231) target = $region40
      $region39: #{tpu_custom_call.1} parent=5 // pred_region
        // Predicated region
        $region41: #{tpu_custom_call.1} parent=39 // pred_check
          %p234 = pneg %p39
        $region42: #{tpu_custom_call.1} parent=39 // pred_check_branch
          %236 = sbr.rel (%p234) target = $region44
        $region43: #{tpu_custom_call.1} parent=39 // pred_region
          %s237 = sand.u32 %s29, 1
          %s238 = scalar_lea.sflag [#allocation3], %s237
          %s239 = sand.u32 %s29, 1
          %s240 = smul.addr %s239, 256
          %s241 = scalar_lea.vmem [#allocation2], %s240
          %s243 = ssub.s32 4096, 4096
          %244 = vsyncadd %s238, %s243
          %s245 = smul.addr %s19, 32
          %s246 = smul.addr %s245, 128
          %s247 = scalar_lea.hbm %s0, %s246
          %s248 = sshll.u32 %s241, 4
          %s249 = int_to_ptr.vmem [resolvable:$true] %s248
          %254 = dma.hbm_to_vmem [thread:$0]  %s247, 4096, %s249, %s238, 128, 128, 8
        $region44: #{tpu_custom_call.1} parent=39 // pred_fallthru
          _
      $region40: #{tpu_custom_call.1} parent=5 // pred_fallthru
        _
      %p255 = scmp.le.s32.totalorder 1, %s19
      %p256 = scmp.lt.s32.totalorder %s19, 3
      %p257 = pnand %p255, %p256
      %p258 = pneg %p257
      // Predicated region
      $region45: #{tpu_custom_call.1} parent=5 // pred_check
        _
      $region46: #{tpu_custom_call.1} parent=5 // pred_check_branch
        %260 = sbr.rel (%p257) target = $region48
      $region47: #{tpu_custom_call.1} parent=5 // pred_region
        %s261 = ssub.s32 %s19, 1
        %s262 = sand.u32 %s32, 1
        %s263 = scalar_lea.sflag [#allocation3], %s262
        %s264 = sand.u32 %s32, 1
        %s265 = smul.addr %s264, 256
        %s266 = scalar_lea.vmem [#allocation2], %s265
        // Predicated region
        $region49: #{tpu_custom_call.1} parent=47 // pred_check
          %p267 = pneg %p45
        $region50: #{tpu_custom_call.1} parent=47 // pred_check_branch
          %269 = sbr.rel (%p267) target = $region52
        $region51: #{tpu_custom_call.1} parent=47 // pred_region
          %270 = dma.done %s263, 4096
        $region52: #{tpu_custom_call.1} parent=47 // pred_fallthru
          _
        %s271 = sand.u32 %s32, 1
        %s272 = scalar_lea.sflag [#allocation3], %s271
        %s273 = sand.u32 %s32, 1
        %s274 = smul.addr %s273, 256
        %s275 = scalar_lea.vmem [#allocation2], %s274
        %p276 = pneg %p45
        %p277 = pneg %p42
        %p278 = pneg %p66
        %p279 = pneg %p63
        %p280 = pneg %p87
        %p281 = pneg %p84
        %p282 = pneg %p108
        %p283 = pneg %p105
        %p284 = pneg %p129
        %p285 = pneg %p126
        %p286 = pneg %p150
        %p287 = pneg %p147
        %p288 = pneg %p171
        %p289 = pneg %p168
        %p290 = pneg %p197
        %p291 = pneg %p194
        %s292 = sand.u32 %s184, 1
        %s293 = scalar_lea.sflag [#allocation4], %s292
        %s294 = sand.u32 %s184, 1
        %s295 = smul.addr %s294, 256
        %s296 = scalar_lea.vmem [#allocation5], %s295
        %v298 = vld [vmem:[%s266] sm:$0xff]
        %v299 = vld [vmem:[%s266 + $0x8] sm:$0xff]
        %v300 = vld [vmem:[%s266 + $0x10] sm:$0xff]
        %v301 = vld [vmem:[%s266 + $0x18] sm:$0xff]
        %v302 = vld [vmem:[%s266 + $0x20] sm:$0xff]
        %v303 = vld [vmem:[%s266 + $0x28] sm:$0xff]
        %v304 = vld [vmem:[%s266 + $0x30] sm:$0xff]
        %v305 = vld [vmem:[%s266 + $0x38] sm:$0xff]
        %v306 = vld [vmem:[%s266 + $0x40] sm:$0xff]
        %v307 = vld [vmem:[%s266 + $0x48] sm:$0xff]
        %v308 = vld [vmem:[%s266 + $0x50] sm:$0xff]
        %v309 = vld [vmem:[%s266 + $0x58] sm:$0xff]
        %v310 = vld [vmem:[%s266 + $0x60] sm:$0xff]
        %v311 = vld [vmem:[%s266 + $0x68] sm:$0xff]
        %v312 = vld [vmem:[%s266 + $0x70] sm:$0xff]
        %v313 = vld [vmem:[%s266 + $0x78] sm:$0xff]
        %v314 = vld [vmem:[%s266 + $0x80] sm:$0xff]
        %v315 = vld [vmem:[%s266 + $0x88] sm:$0xff]
        %v316 = vld [vmem:[%s266 + $0x90] sm:$0xff]
        %v317 = vld [vmem:[%s266 + $0x98] sm:$0xff]
        %v318 = vld [vmem:[%s266 + $0xa0] sm:$0xff]
        %v319 = vld [vmem:[%s266 + $0xa8] sm:$0xff]
        %v320 = vld [vmem:[%s266 + $0xb0] sm:$0xff]
        %v321 = vld [vmem:[%s266 + $0xb8] sm:$0xff]
        %v322 = vld [vmem:[%s266 + $0xc0] sm:$0xff]
        %v323 = vld [vmem:[%s266 + $0xc8] sm:$0xff]
        %v324 = vld [vmem:[%s266 + $0xd0] sm:$0xff]
        %v325 = vld [vmem:[%s266 + $0xd8] sm:$0xff]
        %v326 = vld [vmem:[%s266 + $0xe0] sm:$0xff]
        %v327 = vld [vmem:[%s266 + $0xe8] sm:$0xff]
        %v328 = vld [vmem:[%s266 + $0xf0] sm:$0xff]
        %v329 = vld [vmem:[%s266 + $0xf8] sm:$0xff]
        %v330 = vpack.c.bf16 %v299, %v298
        %v331 = vpack.c.bf16 %v301, %v300
        %v332 = vpack.c.bf16 %v303, %v302
        %v333 = vpack.c.bf16 %v305, %v304
        %v334 = vpack.c.bf16 %v307, %v306
        %v335 = vpack.c.bf16 %v309, %v308
        %v336 = vpack.c.bf16 %v311, %v310
        %v337 = vpack.c.bf16 %v313, %v312
        %v338 = vpack.c.bf16 %v315, %v314
        %v339 = vpack.c.bf16 %v317, %v316
        %v340 = vpack.c.bf16 %v319, %v318
        %v341 = vpack.c.bf16 %v321, %v320
        %v342 = vpack.c.bf16 %v323, %v322
        %v343 = vpack.c.bf16 %v325, %v324
        %v344 = vpack.c.bf16 %v327, %v326
        %v345 = vpack.c.bf16 %v329, %v328
        %v346 = vld [vmem:[%s1] sm:$0xf]
        %v347 = vld [vmem:[%s1 + $0x4] sm:$0xf]
        %v348 = vld [vmem:[%s1 + $0x8] sm:$0xf]
        %v349 = vld [vmem:[%s1 + $0xc] sm:$0xf]
        %v350 = vld [vmem:[%s1 + $0x10] sm:$0xf]
        %v351 = vld [vmem:[%s1 + $0x14] sm:$0xf]
        %v352 = vld [vmem:[%s1 + $0x18] sm:$0xf]
        %v353 = vld [vmem:[%s1 + $0x1c] sm:$0xf]
        %v354 = vld [vmem:[%s1 + $0x20] sm:$0xf]
        %v355 = vld [vmem:[%s1 + $0x24] sm:$0xf]
        %v356 = vld [vmem:[%s1 + $0x28] sm:$0xf]
        %v357 = vld [vmem:[%s1 + $0x2c] sm:$0xf]
        %v358 = vld [vmem:[%s1 + $0x30] sm:$0xf]
        %v359 = vld [vmem:[%s1 + $0x34] sm:$0xf]
        %v360 = vld [vmem:[%s1 + $0x38] sm:$0xf]
        %v361 = vld [vmem:[%s1 + $0x3c] sm:$0xf]
        %v362 = vld [vmem:[%s4] sm:$0x1]
        %v364 = vlaneseq
        %v365 = vshrl.u32 %v364, 7
        %v366 = vsub.s32 0, %v365
        %v367 = vrot.slane %v362, %v366
        %v385 = vunpack.c.l.b16 %v346
        %v386 = vunpack.c.l.b16 %v347
        %v387 = vunpack.c.l.b16 %v348
        %v388 = vunpack.c.l.b16 %v349
        %v389 = vunpack.c.l.b16 %v350
        %v390 = vunpack.c.l.b16 %v351
        %v391 = vunpack.c.l.b16 %v352
        %v392 = vunpack.c.l.b16 %v353
        %v393 = vunpack.c.l.b16 %v354
        %v394 = vunpack.c.l.b16 %v355
        %v395 = vunpack.c.l.b16 %v356
        %v396 = vunpack.c.l.b16 %v357
        %v397 = vunpack.c.l.b16 %v358
        %v398 = vunpack.c.l.b16 %v359
        %v399 = vunpack.c.l.b16 %v360
        %v400 = vunpack.c.l.b16 %v361
        %v401 = vpack.c.b16 %v386, %v385
        %v402 = vpack.c.b16 %v388, %v387
        %v403 = vpack.c.b16 %v390, %v389
        %v404 = vpack.c.b16 %v392, %v391
        %v405 = vpack.c.b16 %v394, %v393
        %v406 = vpack.c.b16 %v396, %v395
        %v407 = vpack.c.b16 %v398, %v397
        %v408 = vpack.c.b16 %v400, %v399
        %417 = vmatprep.subr.bf16.mxu0 0
        %418 = vmatpush1.bf16.msra.mxu0 %v401
        %419 = vmatprep.subr.bf16.mxu0 0
        %420 = vmatpush1.bf16.msra.mxu0 %v402
        %421 = vmatprep.subr.bf16.mxu0 0
        %422 = vmatpush1.bf16.msra.mxu0 %v403
        %423 = vmatprep.subr.bf16.mxu0 0
        %424 = vmatpush1.bf16.msra.mxu0 %v404
        %425 = vmatprep.subr.bf16.mxu0 0
        %426 = vmatpush1.bf16.msra.mxu0 %v405
        %427 = vmatprep.subr.bf16.mxu0 0
        %428 = vmatpush1.bf16.msra.mxu0 %v406
        %429 = vmatprep.subr.bf16.mxu0 0
        %430 = vmatpush1.bf16.msra.mxu0 %v407
        %431 = vmatprep.subr.bf16.mxu0 0
        %432 = vmatpush1.bf16.msra.mxu0 %v408
        %433 = vmatprep.subr.bf16.mxu0 0
        %434 = vmatpush1.bf16.msra.mxu0 0
        %435 = vmatprep.subr.bf16.mxu0 0
        %436 = vmatpush1.bf16.msra.mxu0 0
        %437 = vmatprep.subr.bf16.mxu0 0
        %438 = vmatpush1.bf16.msra.mxu0 0
        %439 = vmatprep.subr.bf16.mxu0 0
        %440 = vmatpush1.bf16.msra.mxu0 0
        %441 = vmatprep.subr.bf16.mxu0 0
        %442 = vmatpush1.bf16.msra.mxu0 0
        %443 = vmatprep.subr.bf16.mxu0 0
        %444 = vmatpush1.bf16.msra.mxu0 0
        %445 = vmatprep.subr.bf16.mxu0 0
        %446 = vmatpush1.bf16.msra.mxu0 0
        %447 = vmatprep.subr.bf16.mxu0 0
        %448 = vmatpush1.bf16.msra.mxu0 0
        %449 = vmatprep.mubr.bf16.mxu0 0
        %450 = vmatmul.mubr.bf16.gmra.mrb[0].mxu0 %v330
        %v451 = vpop.f32.mrb[0].mxu0
        %v452 = vadd.f32 %v367, %v451
        %v453 = vpop.f32.mrb[0].mxu0
        %v454 = vpop.f32.mrb[0].mxu0
        %v455 = vadd.f32 %v367, %v454
        %v456 = vpop.f32.mrb[0].mxu0
        %457 = vmatprep.mubr.bf16.mxu0 0
        %458 = vmatmul.mubr.bf16.gmra.mrb[0].mxu0 %v331
        %v459 = vpop.f32.mrb[0].mxu0
        %v460 = vadd.f32 %v367, %v459
        %v461 = vpop.f32.mrb[0].mxu0
        %v462 = vpop.f32.mrb[0].mxu0
        %v463 = vadd.f32 %v367, %v462
        %v464 = vpop.f32.mrb[0].mxu0
        %465 = vmatprep.mubr.bf16.mxu0 0
        %466 = vmatmul.mubr.bf16.gmra.mrb[0].mxu0 %v332
        %v467 = vpop.f32.mrb[0].mxu0
        %v468 = vadd.f32 %v367, %v467
        %v469 = vpop.f32.mrb[0].mxu0
        %v470 = vpop.f32.mrb[0].mxu0
        %v471 = vadd.f32 %v367, %v470
        %v472 = vpop.f32.mrb[0].mxu0
        %473 = vmatprep.mubr.bf16.mxu0 0
        %474 = vmatmul.mubr.bf16.gmra.mrb[0].mxu0 %v333
        %v475 = vpop.f32.mrb[0].mxu0
        %v476 = vadd.f32 %v367, %v475
        %v477 = vpop.f32.mrb[0].mxu0
        %v478 = vpop.f32.mrb[0].mxu0
        %v479 = vadd.f32 %v367, %v478
        %v480 = vpop.f32.mrb[0].mxu0
        %481 = vmatprep.mubr.bf16.mxu0 0
        %482 = vmatmul.mubr.bf16.gmra.mrb[0].mxu0 %v334
        %v483 = vpop.f32.mrb[0].mxu0
        %v484 = vadd.f32 %v367, %v483
        %v485 = vpop.f32.mrb[0].mxu0
        %v486 = vpop.f32.mrb[0].mxu0
        %v487 = vadd.f32 %v367, %v486
        %v488 = vpop.f32.mrb[0].mxu0
        %489 = vmatprep.mubr.bf16.mxu0 0
        %490 = vmatmul.mubr.bf16.gmra.mrb[0].mxu0 %v335
        %v491 = vpop.f32.mrb[0].mxu0
        %v492 = vadd.f32 %v367, %v491
        %v493 = vpop.f32.mrb[0].mxu0
        %v494 = vpop.f32.mrb[0].mxu0
        %v495 = vadd.f32 %v367, %v494
        %v496 = vpop.f32.mrb[0].mxu0
        %497 = vmatprep.mubr.bf16.mxu0 0
        %498 = vmatmul.mubr.bf16.gmra.mrb[0].mxu0 %v336
        %v499 = vpop.f32.mrb[0].mxu0
        %v500 = vadd.f32 %v367, %v499
        %v501 = vpop.f32.mrb[0].mxu0
        %v502 = vpop.f32.mrb[0].mxu0
        %v503 = vadd.f32 %v367, %v502
        %v504 = vpop.f32.mrb[0].mxu0
        %505 = vmatprep.mubr.bf16.mxu0 0
        %506 = vmatmul.mubr.bf16.gmra.mrb[0].mxu0 %v337
        %v507 = vpop.f32.mrb[0].mxu0
        %v508 = vadd.f32 %v367, %v507
        %v509 = vpop.f32.mrb[0].mxu0
        %v510 = vpop.f32.mrb[0].mxu0
        %v511 = vadd.f32 %v367, %v510
        %v512 = vpop.f32.mrb[0].mxu0
        %513 = vmatprep.mubr.bf16.mxu0 0
        %514 = vmatmul.mubr.bf16.gmra.mrb[0].mxu0 %v338
        %v515 = vpop.f32.mrb[0].mxu0
        %v516 = vadd.f32 %v367, %v515
        %v517 = vpop.f32.mrb[0].mxu0
        %v518 = vpop.f32.mrb[0].mxu0
        %v519 = vadd.f32 %v367, %v518
        %v520 = vpop.f32.mrb[0].mxu0
        %521 = vmatprep.mubr.bf16.mxu0 0
        %522 = vmatmul.mubr.bf16.gmra.mrb[0].mxu0 %v339
        %v523 = vpop.f32.mrb[0].mxu0
        %v524 = vadd.f32 %v367, %v523
        %v525 = vpop.f32.mrb[0].mxu0
        %v526 = vpop.f32.mrb[0].mxu0
        %v527 = vadd.f32 %v367, %v526
        %v528 = vpop.f32.mrb[0].mxu0
        %529 = vmatprep.mubr.bf16.mxu0 0
        %530 = vmatmul.mubr.bf16.gmra.mrb[0].mxu0 %v340
        %v531 = vpop.f32.mrb[0].mxu0
        %v532 = vadd.f32 %v367, %v531
        %v533 = vpop.f32.mrb[0].mxu0
        %v534 = vpop.f32.mrb[0].mxu0
        %v535 = vadd.f32 %v367, %v534
        %v536 = vpop.f32.mrb[0].mxu0
        %537 = vmatprep.mubr.bf16.mxu0 0
        %538 = vmatmul.mubr.bf16.gmra.mrb[0].mxu0 %v341
        %v539 = vpop.f32.mrb[0].mxu0
        %v540 = vadd.f32 %v367, %v539
        %v541 = vpop.f32.mrb[0].mxu0
        %v542 = vpop.f32.mrb[0].mxu0
        %v543 = vadd.f32 %v367, %v542
        %v544 = vpop.f32.mrb[0].mxu0
        %545 = vmatprep.mubr.bf16.mxu0 0
        %546 = vmatmul.mubr.bf16.gmra.mrb[0].mxu0 %v342
        %v547 = vpop.f32.mrb[0].mxu0
        %v548 = vadd.f32 %v367, %v547
        %v549 = vpop.f32.mrb[0].mxu0
        %v550 = vpop.f32.mrb[0].mxu0
        %v551 = vadd.f32 %v367, %v550
        %v552 = vpop.f32.mrb[0].mxu0
        %553 = vmatprep.mubr.bf16.mxu0 0
        %554 = vmatmul.mubr.bf16.gmra.mrb[0].mxu0 %v343
        %v555 = vpop.f32.mrb[0].mxu0
        %v556 = vadd.f32 %v367, %v555
        %v557 = vpop.f32.mrb[0].mxu0
        %v558 = vpop.f32.mrb[0].mxu0
        %v559 = vadd.f32 %v367, %v558
        %v560 = vpop.f32.mrb[0].mxu0
        %561 = vmatprep.mubr.bf16.mxu0 0
        %562 = vmatmul.mubr.bf16.gmra.mrb[0].mxu0 %v344
        %v563 = vpop.f32.mrb[0].mxu0
        %v564 = vadd.f32 %v367, %v563
        %v565 = vpop.f32.mrb[0].mxu0
        %v566 = vpop.f32.mrb[0].mxu0
        %v567 = vadd.f32 %v367, %v566
        %v568 = vpop.f32.mrb[0].mxu0
        %569 = vmatprep.mubr.bf16.mxu0 0
        %570 = vmatmul.mubr.bf16.gmra.mrb[0].mxu0 %v345
        %v571 = vpop.f32.mrb[0].mxu0
        %v572 = vadd.f32 %v367, %v571
        %v573 = vpop.f32.mrb[0].mxu0
        %v574 = vpop.f32.mrb[0].mxu0
        %v575 = vadd.f32 %v367, %v574
        %v576 = vpop.f32.mrb[0].mxu0
        %577 = vdwg.mxu0
        %v578 = vmax.f32 %v452, 0.0
        %v579 = vmax.f32 %v455, 0.0
        %v580 = vmax.f32 %v460, 0.0
        %v581 = vmax.f32 %v463, 0.0
        %v582 = vmax.f32 %v468, 0.0
        %v583 = vmax.f32 %v471, 0.0
        %v584 = vmax.f32 %v476, 0.0
        %v585 = vmax.f32 %v479, 0.0
        %v586 = vmax.f32 %v484, 0.0
        %v587 = vmax.f32 %v487, 0.0
        %v588 = vmax.f32 %v492, 0.0
        %v589 = vmax.f32 %v495, 0.0
        %v590 = vmax.f32 %v500, 0.0
        %v591 = vmax.f32 %v503, 0.0
        %v592 = vmax.f32 %v508, 0.0
        %v593 = vmax.f32 %v511, 0.0
        %v594 = vmax.f32 %v516, 0.0
        %v595 = vmax.f32 %v519, 0.0
        %v596 = vmax.f32 %v524, 0.0
        %v597 = vmax.f32 %v527, 0.0
        %v598 = vmax.f32 %v532, 0.0
        %v599 = vmax.f32 %v535, 0.0
        %v600 = vmax.f32 %v540, 0.0
        %v601 = vmax.f32 %v543, 0.0
        %v602 = vmax.f32 %v548, 0.0
        %v603 = vmax.f32 %v551, 0.0
        %v604 = vmax.f32 %v556, 0.0
        %v605 = vmax.f32 %v559, 0.0
        %v606 = vmax.f32 %v564, 0.0
        %v607 = vmax.f32 %v567, 0.0
        %v608 = vmax.f32 %v572, 0.0
        %v609 = vmax.f32 %v575, 0.0
        %vm643 = vcmask 1040384
        %v644 = vrot.slane 0.0, 7
        %v645 = vsel %vm643, %v644, %v644
        %v646 = vrot.slane %v578, 7
        %v647 = vrot.slane %v579, 7
        %v648 = vsel %vm643, %v646, %v647
        %v649 = vrot.slane %v580, 7
        %v650 = vrot.slane %v581, 7
        %v651 = vsel %vm643, %v649, %v650
        %v652 = vrot.slane %v582, 7
        %v653 = vrot.slane %v583, 7
        %v654 = vsel %vm643, %v652, %v653
        %v655 = vrot.slane %v584, 7
        %v656 = vrot.slane %v585, 7
        %v657 = vsel %vm643, %v655, %v656
        %v658 = vrot.slane %v586, 7
        %v659 = vrot.slane %v587, 7
        %v660 = vsel %vm643, %v658, %v659
        %v661 = vrot.slane %v588, 7
        %v662 = vrot.slane %v589, 7
        %v663 = vsel %vm643, %v661, %v662
        %v664 = vrot.slane %v590, 7
        %v665 = vrot.slane %v591, 7
        %v666 = vsel %vm643, %v664, %v665
        %v667 = vrot.slane %v592, 7
        %v668 = vrot.slane %v593, 7
        %v669 = vsel %vm643, %v667, %v668
        %v670 = vrot.slane %v594, 7
        %v671 = vrot.slane %v595, 7
        %v672 = vsel %vm643, %v670, %v671
        %v673 = vrot.slane %v596, 7
        %v674 = vrot.slane %v597, 7
        %v675 = vsel %vm643, %v673, %v674
        %v676 = vrot.slane %v598, 7
        %v677 = vrot.slane %v599, 7
        %v678 = vsel %vm643, %v676, %v677
        %v679 = vrot.slane %v600, 7
        %v680 = vrot.slane %v601, 7
        %v681 = vsel %vm643, %v679, %v680
        %v682 = vrot.slane %v602, 7
        %v683 = vrot.slane %v603, 7
        %v684 = vsel %vm643, %v682, %v683
        %v685 = vrot.slane %v604, 7
        %v686 = vrot.slane %v605, 7
        %v687 = vsel %vm643, %v685, %v686
        %v688 = vrot.slane %v606, 7
        %v689 = vrot.slane %v607, 7
        %v690 = vsel %vm643, %v688, %v689
        %v691 = vrot.slane %v608, 7
        %v692 = vrot.slane %v609, 7
        %v693 = vsel %vm643, %v691, %v692
        %v728 = vsel %vm643, 0.0, %v644
        %v729 = vsel %vm643, 0.0, %v646
        %v730 = vsel %vm643, 0.0, %v649
        %v731 = vsel %vm643, 0.0, %v652
        %v732 = vsel %vm643, 0.0, %v655
        %v733 = vsel %vm643, 0.0, %v658
        %v734 = vsel %vm643, 0.0, %v661
        %v735 = vsel %vm643, 0.0, %v664
        %v736 = vsel %vm643, 0.0, %v667
        %v737 = vsel %vm643, 0.0, %v670
        %v738 = vsel %vm643, 0.0, %v673
        %v739 = vsel %vm643, 0.0, %v676
        %v740 = vsel %vm643, 0.0, %v679
        %v741 = vsel %vm643, 0.0, %v682
        %v742 = vsel %vm643, 0.0, %v685
        %v743 = vsel %vm643, 0.0, %v688
        %v744 = vsel %vm643, 0.0, %v691
        %vm745 = vcmask 1046528
        %v746 = vrot.slane 0.0, 1
        %v747 = vsel %vm745, %v746, %v746
        %v748 = vrot.slane %v578, 1
        %v749 = vrot.slane %v579, 1
        %v750 = vsel %vm745, %v748, %v749
        %v751 = vrot.slane %v580, 1
        %v752 = vrot.slane %v581, 1
        %v753 = vsel %vm745, %v751, %v752
        %v754 = vrot.slane %v582, 1
        %v755 = vrot.slane %v583, 1
        %v756 = vsel %vm745, %v754, %v755
        %v757 = vrot.slane %v584, 1
        %v758 = vrot.slane %v585, 1
        %v759 = vsel %vm745, %v757, %v758
        %v760 = vrot.slane %v586, 1
        %v761 = vrot.slane %v587, 1
        %v762 = vsel %vm745, %v760, %v761
        %v763 = vrot.slane %v588, 1
        %v764 = vrot.slane %v589, 1
        %v765 = vsel %vm745, %v763, %v764
        %v766 = vrot.slane %v590, 1
        %v767 = vrot.slane %v591, 1
        %v768 = vsel %vm745, %v766, %v767
        %v769 = vrot.slane %v592, 1
        %v770 = vrot.slane %v593, 1
        %v771 = vsel %vm745, %v769, %v770
        %v772 = vrot.slane %v594, 1
        %v773 = vrot.slane %v595, 1
        %v774 = vsel %vm745, %v772, %v773
        %v775 = vrot.slane %v596, 1
        %v776 = vrot.slane %v597, 1
        %v777 = vsel %vm745, %v775, %v776
        %v778 = vrot.slane %v598, 1
        %v779 = vrot.slane %v599, 1
        %v780 = vsel %vm745, %v778, %v779
        %v781 = vrot.slane %v600, 1
        %v782 = vrot.slane %v601, 1
        %v783 = vsel %vm745, %v781, %v782
        %v784 = vrot.slane %v602, 1
        %v785 = vrot.slane %v603, 1
        %v786 = vsel %vm745, %v784, %v785
        %v787 = vrot.slane %v604, 1
        %v788 = vrot.slane %v605, 1
        %v789 = vsel %vm745, %v787, %v788
        %v790 = vrot.slane %v606, 1
        %v791 = vrot.slane %v607, 1
        %v792 = vsel %vm745, %v790, %v791
        %v793 = vrot.slane %v608, 1
        %v794 = vrot.slane %v609, 1
        %v795 = vsel %vm745, %v793, %v794
        %v813 = vsel %vm745, %v746, 0.0
        %v814 = vsel %vm745, %v749, 0.0
        %v815 = vsel %vm745, %v752, 0.0
        %v816 = vsel %vm745, %v755, 0.0
        %v817 = vsel %vm745, %v758, 0.0
        %v818 = vsel %vm745, %v761, 0.0
        %v819 = vsel %vm745, %v764, 0.0
        %v820 = vsel %vm745, %v767, 0.0
        %v821 = vsel %vm745, %v770, 0.0
        %v822 = vsel %vm745, %v773, 0.0
        %v823 = vsel %vm745, %v776, 0.0
        %v824 = vsel %vm745, %v779, 0.0
        %v825 = vsel %vm745, %v782, 0.0
        %v826 = vsel %vm745, %v785, 0.0
        %v827 = vsel %vm745, %v788, 0.0
        %v828 = vsel %vm745, %v791, 0.0
        %v829 = vsel %vm745, %v794, 0.0
        %830 = vrot.lane.b32.xlu0 0.0, 32
        %v831 = vpop.permute.xlu0 %830
        %832 = vrot.lane.b32.xlu0 %v578, 32
        %v833 = vpop.permute.xlu0 %832
        %834 = vrot.lane.b32.xlu0 %v579, 32
        %v835 = vpop.permute.xlu0 %834
        %836 = vrot.lane.b32.xlu0 %v580, 32
        %v837 = vpop.permute.xlu0 %836
        %838 = vrot.lane.b32.xlu0 %v581, 32
        %v839 = vpop.permute.xlu0 %838
        %840 = vrot.lane.b32.xlu0 %v582, 32
        %v841 = vpop.permute.xlu0 %840
        %842 = vrot.lane.b32.xlu0 %v583, 32
        %v843 = vpop.permute.xlu0 %842
        %844 = vrot.lane.b32.xlu0 %v584, 32
        %v845 = vpop.permute.xlu0 %844
        %846 = vrot.lane.b32.xlu0 %v585, 32
        %v847 = vpop.permute.xlu0 %846
        %848 = vrot.lane.b32.xlu0 %v586, 32
        %v849 = vpop.permute.xlu0 %848
        %850 = vrot.lane.b32.xlu0 %v587, 32
        %v851 = vpop.permute.xlu0 %850
        %852 = vrot.lane.b32.xlu0 %v588, 32
        %v853 = vpop.permute.xlu0 %852
        %854 = vrot.lane.b32.xlu0 %v589, 32
        %v855 = vpop.permute.xlu0 %854
        %856 = vrot.lane.b32.xlu0 %v590, 32
        %v857 = vpop.permute.xlu0 %856
        %858 = vrot.lane.b32.xlu0 %v591, 32
        %v859 = vpop.permute.xlu0 %858
        %860 = vrot.lane.b32.xlu0 %v592, 32
        %v861 = vpop.permute.xlu0 %860
        %862 = vrot.lane.b32.xlu0 %v593, 32
        %v863 = vpop.permute.xlu0 %862
        %864 = vrot.lane.b32.xlu0 %v594, 32
        %v865 = vpop.permute.xlu0 %864
        %866 = vrot.lane.b32.xlu0 %v595, 32
        %v867 = vpop.permute.xlu0 %866
        %868 = vrot.lane.b32.xlu0 %v596, 32
        %v869 = vpop.permute.xlu0 %868
        %870 = vrot.lane.b32.xlu0 %v597, 32
        %v871 = vpop.permute.xlu0 %870
        %872 = vrot.lane.b32.xlu0 %v598, 32
        %v873 = vpop.permute.xlu0 %872
        %874 = vrot.lane.b32.xlu0 %v599, 32
        %v875 = vpop.permute.xlu0 %874
        %876 = vrot.lane.b32.xlu0 %v600, 32
        %v877 = vpop.permute.xlu0 %876
        %878 = vrot.lane.b32.xlu0 %v601, 32
        %v879 = vpop.permute.xlu0 %878
        %880 = vrot.lane.b32.xlu0 %v602, 32
        %v881 = vpop.permute.xlu0 %880
        %882 = vrot.lane.b32.xlu0 %v603, 32
        %v883 = vpop.permute.xlu0 %882
        %884 = vrot.lane.b32.xlu0 %v604, 32
        %v885 = vpop.permute.xlu0 %884
        %886 = vrot.lane.b32.xlu0 %v605, 32
        %v887 = vpop.permute.xlu0 %886
        %888 = vrot.lane.b32.xlu0 %v606, 32
        %v889 = vpop.permute.xlu0 %888
        %890 = vrot.lane.b32.xlu0 %v607, 32
        %v891 = vpop.permute.xlu0 %890
        %892 = vrot.lane.b32.xlu0 %v608, 32
        %v893 = vpop.permute.xlu0 %892
        %894 = vrot.lane.b32.xlu0 %v609, 32
        %v895 = vpop.permute.xlu0 %894
        %946 = vrot.lane.b32.xlu0 %v747, 64
        %v947 = vpop.permute.xlu0 %946
        %948 = vrot.lane.b32.xlu0 %v813, 64
        %v949 = vpop.permute.xlu0 %948
        %950 = vrot.lane.b32.xlu0 %v750, 64
        %v951 = vpop.permute.xlu0 %950
        %952 = vrot.lane.b32.xlu0 %v814, 64
        %v953 = vpop.permute.xlu0 %952
        %954 = vrot.lane.b32.xlu0 %v753, 64
        %v955 = vpop.permute.xlu0 %954
        %956 = vrot.lane.b32.xlu0 %v815, 64
        %v957 = vpop.permute.xlu0 %956
        %958 = vrot.lane.b32.xlu0 %v756, 64
        %v959 = vpop.permute.xlu0 %958
        %960 = vrot.lane.b32.xlu0 %v816, 64
        %v961 = vpop.permute.xlu0 %960
        %962 = vrot.lane.b32.xlu0 %v759, 64
        %v963 = vpop.permute.xlu0 %962
        %964 = vrot.lane.b32.xlu0 %v817, 64
        %v965 = vpop.permute.xlu0 %964
        %966 = vrot.lane.b32.xlu0 %v762, 64
        %v967 = vpop.permute.xlu0 %966
        %968 = vrot.lane.b32.xlu0 %v818, 64
        %v969 = vpop.permute.xlu0 %968
        %970 = vrot.lane.b32.xlu0 %v765, 64
        %v971 = vpop.permute.xlu0 %970
        %972 = vrot.lane.b32.xlu0 %v819, 64
        %v973 = vpop.permute.xlu0 %972
        %974 = vrot.lane.b32.xlu0 %v768, 64
        %v975 = vpop.permute.xlu0 %974
        %976 = vrot.lane.b32.xlu0 %v820, 64
        %v977 = vpop.permute.xlu0 %976
        %978 = vrot.lane.b32.xlu0 %v771, 64
        %v979 = vpop.permute.xlu0 %978
        %980 = vrot.lane.b32.xlu0 %v821, 64
        %v981 = vpop.permute.xlu0 %980
        %982 = vrot.lane.b32.xlu0 %v774, 64
        %v983 = vpop.permute.xlu0 %982
        %984 = vrot.lane.b32.xlu0 %v822, 64
        %v985 = vpop.permute.xlu0 %984
        %986 = vrot.lane.b32.xlu0 %v777, 64
        %v987 = vpop.permute.xlu0 %986
        %988 = vrot.lane.b32.xlu0 %v823, 64
        %v989 = vpop.permute.xlu0 %988
        %990 = vrot.lane.b32.xlu0 %v780, 64
        %v991 = vpop.permute.xlu0 %990
        %992 = vrot.lane.b32.xlu0 %v824, 64
        %v993 = vpop.permute.xlu0 %992
        %994 = vrot.lane.b32.xlu0 %v783, 64
        %v995 = vpop.permute.xlu0 %994
        %996 = vrot.lane.b32.xlu0 %v825, 64
        %v997 = vpop.permute.xlu0 %996
        %998 = vrot.lane.b32.xlu0 %v786, 64
        %v999 = vpop.permute.xlu0 %998
        %1000 = vrot.lane.b32.xlu0 %v826, 64
        %v1001 = vpop.permute.xlu0 %1000
        %1002 = vrot.lane.b32.xlu0 %v789, 64
        %v1003 = vpop.permute.xlu0 %1002
        %1004 = vrot.lane.b32.xlu0 %v827, 64
        %v1005 = vpop.permute.xlu0 %1004
        %1006 = vrot.lane.b32.xlu0 %v792, 64
        %v1007 = vpop.permute.xlu0 %1006
        %1008 = vrot.lane.b32.xlu0 %v828, 64
        %v1009 = vpop.permute.xlu0 %1008
        %1010 = vrot.lane.b32.xlu0 %v795, 64
        %v1011 = vpop.permute.xlu0 %1010
        %1012 = vrot.lane.b32.xlu0 %v829, 64
        %v1013 = vpop.permute.xlu0 %1012
        %vm1048 = vcmask 261120
        %v1049 = vsel %vm1048, %v728, %v831
        %v1050 = vsel %vm1048, %v645, %v831
        %v1051 = vsel %vm1048, %v729, %v833
        %v1052 = vsel %vm1048, %v648, %v835
        %v1053 = vsel %vm1048, %v730, %v837
        %v1054 = vsel %vm1048, %v651, %v839
        %v1055 = vsel %vm1048, %v731, %v841
        %v1056 = vsel %vm1048, %v654, %v843
        %v1057 = vsel %vm1048, %v732, %v845
        %v1058 = vsel %vm1048, %v657, %v847
        %v1059 = vsel %vm1048, %v733, %v849
        %v1060 = vsel %vm1048, %v660, %v851
        %v1061 = vsel %vm1048, %v734, %v853
        %v1062 = vsel %vm1048, %v663, %v855
        %v1063 = vsel %vm1048, %v735, %v857
        %v1064 = vsel %vm1048, %v666, %v859
        %v1065 = vsel %vm1048, %v736, %v861
        %v1066 = vsel %vm1048, %v669, %v863
        %v1067 = vsel %vm1048, %v737, %v865
        %v1068 = vsel %vm1048, %v672, %v867
        %v1069 = vsel %vm1048, %v738, %v869
        %v1070 = vsel %vm1048, %v675, %v871
        %v1071 = vsel %vm1048, %v739, %v873
        %v1072 = vsel %vm1048, %v678, %v875
        %v1073 = vsel %vm1048, %v740, %v877
        %v1074 = vsel %vm1048, %v681, %v879
        %v1075 = vsel %vm1048, %v741, %v881
        %v1076 = vsel %vm1048, %v684, %v883
        %v1077 = vsel %vm1048, %v742, %v885
        %v1078 = vsel %vm1048, %v687, %v887
        %v1079 = vsel %vm1048, %v743, %v889
        %v1080 = vsel %vm1048, %v690, %v891
        %v1081 = vsel %vm1048, %v744, %v893
        %v1082 = vsel %vm1048, %v693, %v895
        %vm1083 = vcmask 523264
        %v1084 = vsel %vm1083, %v1049, %v947
        %v1085 = vsel %vm1083, %v1050, %v949
        %v1086 = vsel %vm1083, %v1051, %v951
        %v1087 = vsel %vm1083, %v1052, %v953
        %v1088 = vsel %vm1083, %v1053, %v955
        %v1089 = vsel %vm1083, %v1054, %v957
        %v1090 = vsel %vm1083, %v1055, %v959
        %v1091 = vsel %vm1083, %v1056, %v961
        %v1092 = vsel %vm1083, %v1057, %v963
        %v1093 = vsel %vm1083, %v1058, %v965
        %v1094 = vsel %vm1083, %v1059, %v967
        %v1095 = vsel %vm1083, %v1060, %v969
        %v1096 = vsel %vm1083, %v1061, %v971
        %v1097 = vsel %vm1083, %v1062, %v973
        %v1098 = vsel %vm1083, %v1063, %v975
        %v1099 = vsel %vm1083, %v1064, %v977
        %v1100 = vsel %vm1083, %v1065, %v979
        %v1101 = vsel %vm1083, %v1066, %v981
        %v1102 = vsel %vm1083, %v1067, %v983
        %v1103 = vsel %vm1083, %v1068, %v985
        %v1104 = vsel %vm1083, %v1069, %v987
        %v1105 = vsel %vm1083, %v1070, %v989
        %v1106 = vsel %vm1083, %v1071, %v991
        %v1107 = vsel %vm1083, %v1072, %v993
        %v1108 = vsel %vm1083, %v1073, %v995
        %v1109 = vsel %vm1083, %v1074, %v997
        %v1110 = vsel %vm1083, %v1075, %v999
        %v1111 = vsel %vm1083, %v1076, %v1001
        %v1112 = vsel %vm1083, %v1077, %v1003
        %v1113 = vsel %vm1083, %v1078, %v1005
        %v1114 = vsel %vm1083, %v1079, %v1007
        %v1115 = vsel %vm1083, %v1080, %v1009
        %v1116 = vsel %vm1083, %v1081, %v1011
        %v1117 = vsel %vm1083, %v1082, %v1013
        %1150 = vrot.lane.b32.xlu0 %v1086, 96
        %v1151 = vpop.permute.xlu0 %1150
        %1152 = vrot.lane.b32.xlu0 %v1087, 96
        %v1153 = vpop.permute.xlu0 %1152
        %1154 = vrot.lane.b32.xlu0 %v1088, 96
        %v1155 = vpop.permute.xlu0 %1154
        %1156 = vrot.lane.b32.xlu0 %v1089, 96
        %v1157 = vpop.permute.xlu0 %1156
        %1158 = vrot.lane.b32.xlu0 %v1090, 96
        %v1159 = vpop.permute.xlu0 %1158
        %1160 = vrot.lane.b32.xlu0 %v1091, 96
        %v1161 = vpop.permute.xlu0 %1160
        %1162 = vrot.lane.b32.xlu0 %v1092, 96
        %v1163 = vpop.permute.xlu0 %1162
        %1164 = vrot.lane.b32.xlu0 %v1093, 96
        %v1165 = vpop.permute.xlu0 %1164
        %1166 = vrot.lane.b32.xlu0 %v1094, 96
        %v1167 = vpop.permute.xlu0 %1166
        %1168 = vrot.lane.b32.xlu0 %v1095, 96
        %v1169 = vpop.permute.xlu0 %1168
        %1170 = vrot.lane.b32.xlu0 %v1096, 96
        %v1171 = vpop.permute.xlu0 %1170
        %1172 = vrot.lane.b32.xlu0 %v1097, 96
        %v1173 = vpop.permute.xlu0 %1172
        %1174 = vrot.lane.b32.xlu0 %v1098, 96
        %v1175 = vpop.permute.xlu0 %1174
        %1176 = vrot.lane.b32.xlu0 %v1099, 96
        %v1177 = vpop.permute.xlu0 %1176
        %1178 = vrot.lane.b32.xlu0 %v1100, 96
        %v1179 = vpop.permute.xlu0 %1178
        %1180 = vrot.lane.b32.xlu0 %v1101, 96
        %v1181 = vpop.permute.xlu0 %1180
        %1182 = vrot.lane.b32.xlu0 %v1102, 96
        %v1183 = vpop.permute.xlu0 %1182
        %1184 = vrot.lane.b32.xlu0 %v1103, 96
        %v1185 = vpop.permute.xlu0 %1184
        %1186 = vrot.lane.b32.xlu0 %v1104, 96
        %v1187 = vpop.permute.xlu0 %1186
        %1188 = vrot.lane.b32.xlu0 %v1105, 96
        %v1189 = vpop.permute.xlu0 %1188
        %1190 = vrot.lane.b32.xlu0 %v1106, 96
        %v1191 = vpop.permute.xlu0 %1190
        %1192 = vrot.lane.b32.xlu0 %v1107, 96
        %v1193 = vpop.permute.xlu0 %1192
        %1194 = vrot.lane.b32.xlu0 %v1108, 96
        %v1195 = vpop.permute.xlu0 %1194
        %1196 = vrot.lane.b32.xlu0 %v1109, 96
        %v1197 = vpop.permute.xlu0 %1196
        %1198 = vrot.lane.b32.xlu0 %v1110, 96
        %v1199 = vpop.permute.xlu0 %1198
        %1200 = vrot.lane.b32.xlu0 %v1111, 96
        %v1201 = vpop.permute.xlu0 %1200
        %1202 = vrot.lane.b32.xlu0 %v1112, 96
        %v1203 = vpop.permute.xlu0 %1202
        %1204 = vrot.lane.b32.xlu0 %v1113, 96
        %v1205 = vpop.permute.xlu0 %1204
        %1206 = vrot.lane.b32.xlu0 %v1114, 96
        %v1207 = vpop.permute.xlu0 %1206
        %1208 = vrot.lane.b32.xlu0 %v1115, 96
        %v1209 = vpop.permute.xlu0 %1208
        %1210 = vrot.lane.b32.xlu0 %v1116, 96
        %v1211 = vpop.permute.xlu0 %1210
        %1212 = vrot.lane.b32.xlu0 %v1117, 96
        %v1213 = vpop.permute.xlu0 %1212
        %1248 = vrot.lane.b32.xlu0 %v1088, 64
        %v1249 = vpop.permute.xlu0 %1248
        %1250 = vrot.lane.b32.xlu0 %v1089, 64
        %v1251 = vpop.permute.xlu0 %1250
        %1252 = vrot.lane.b32.xlu0 %v1090, 64
        %v1253 = vpop.permute.xlu0 %1252
        %1254 = vrot.lane.b32.xlu0 %v1091, 64
        %v1255 = vpop.permute.xlu0 %1254
        %1256 = vrot.lane.b32.xlu0 %v1092, 64
        %v1257 = vpop.permute.xlu0 %1256
        %1258 = vrot.lane.b32.xlu0 %v1093, 64
        %v1259 = vpop.permute.xlu0 %1258
        %1260 = vrot.lane.b32.xlu0 %v1094, 64
        %v1261 = vpop.permute.xlu0 %1260
        %1262 = vrot.lane.b32.xlu0 %v1095, 64
        %v1263 = vpop.permute.xlu0 %1262
        %1264 = vrot.lane.b32.xlu0 %v1096, 64
        %v1265 = vpop.permute.xlu0 %1264
        %1266 = vrot.lane.b32.xlu0 %v1097, 64
        %v1267 = vpop.permute.xlu0 %1266
        %1268 = vrot.lane.b32.xlu0 %v1098, 64
        %v1269 = vpop.permute.xlu0 %1268
        %1270 = vrot.lane.b32.xlu0 %v1099, 64
        %v1271 = vpop.permute.xlu0 %1270
        %1272 = vrot.lane.b32.xlu0 %v1100, 64
        %v1273 = vpop.permute.xlu0 %1272
        %1274 = vrot.lane.b32.xlu0 %v1101, 64
        %v1275 = vpop.permute.xlu0 %1274
        %1276 = vrot.lane.b32.xlu0 %v1102, 64
        %v1277 = vpop.permute.xlu0 %1276
        %1278 = vrot.lane.b32.xlu0 %v1103, 64
        %v1279 = vpop.permute.xlu0 %1278
        %1280 = vrot.lane.b32.xlu0 %v1104, 64
        %v1281 = vpop.permute.xlu0 %1280
        %1282 = vrot.lane.b32.xlu0 %v1105, 64
        %v1283 = vpop.permute.xlu0 %1282
        %1284 = vrot.lane.b32.xlu0 %v1106, 64
        %v1285 = vpop.permute.xlu0 %1284
        %1286 = vrot.lane.b32.xlu0 %v1107, 64
        %v1287 = vpop.permute.xlu0 %1286
        %1288 = vrot.lane.b32.xlu0 %v1108, 64
        %v1289 = vpop.permute.xlu0 %1288
        %1290 = vrot.lane.b32.xlu0 %v1109, 64
        %v1291 = vpop.permute.xlu0 %1290
        %1292 = vrot.lane.b32.xlu0 %v1110, 64
        %v1293 = vpop.permute.xlu0 %1292
        %1294 = vrot.lane.b32.xlu0 %v1111, 64
        %v1295 = vpop.permute.xlu0 %1294
        %1296 = vrot.lane.b32.xlu0 %v1112, 64
        %v1297 = vpop.permute.xlu0 %1296
        %1298 = vrot.lane.b32.xlu0 %v1113, 64
        %v1299 = vpop.permute.xlu0 %1298
        %1300 = vrot.lane.b32.xlu0 %v1114, 64
        %v1301 = vpop.permute.xlu0 %1300
        %1302 = vrot.lane.b32.xlu0 %v1115, 64
        %v1303 = vpop.permute.xlu0 %1302
        %1304 = vrot.lane.b32.xlu0 %v1116, 64
        %v1305 = vpop.permute.xlu0 %1304
        %1306 = vrot.lane.b32.xlu0 %v1117, 64
        %v1307 = vpop.permute.xlu0 %1306
        %1308 = vrot.lane.b32.xlu0 %v1084, 64
        %v1309 = vpop.permute.xlu0 %1308
        %1310 = vrot.lane.b32.xlu0 %v1085, 64
        %v1311 = vpop.permute.xlu0 %1310
        %vm1344 = vcmask 785408
        %v1345 = vsel %vm1344, %v1084, %v1151
        %v1346 = vsel %vm1344, %v1085, %v1153
        %v1347 = vsel %vm1344, %v1086, %v1155
        %v1348 = vsel %vm1344, %v1087, %v1157
        %v1349 = vsel %vm1344, %v1088, %v1159
        %v1350 = vsel %vm1344, %v1089, %v1161
        %v1351 = vsel %vm1344, %v1090, %v1163
        %v1352 = vsel %vm1344, %v1091, %v1165
        %v1353 = vsel %vm1344, %v1092, %v1167
        %v1354 = vsel %vm1344, %v1093, %v1169
        %v1355 = vsel %vm1344, %v1094, %v1171
        %v1356 = vsel %vm1344, %v1095, %v1173
        %v1357 = vsel %vm1344, %v1096, %v1175
        %v1358 = vsel %vm1344, %v1097, %v1177
        %v1359 = vsel %vm1344, %v1098, %v1179
        %v1360 = vsel %vm1344, %v1099, %v1181
        %v1361 = vsel %vm1344, %v1100, %v1183
        %v1362 = vsel %vm1344, %v1101, %v1185
        %v1363 = vsel %vm1344, %v1102, %v1187
        %v1364 = vsel %vm1344, %v1103, %v1189
        %v1365 = vsel %vm1344, %v1104, %v1191
        %v1366 = vsel %vm1344, %v1105, %v1193
        %v1367 = vsel %vm1344, %v1106, %v1195
        %v1368 = vsel %vm1344, %v1107, %v1197
        %v1369 = vsel %vm1344, %v1108, %v1199
        %v1370 = vsel %vm1344, %v1109, %v1201
        %v1371 = vsel %vm1344, %v1110, %v1203
        %v1372 = vsel %vm1344, %v1111, %v1205
        %v1373 = vsel %vm1344, %v1112, %v1207
        %v1374 = vsel %vm1344, %v1113, %v1209
        %v1375 = vsel %vm1344, %v1114, %v1211
        %v1376 = vsel %vm1344, %v1115, %v1213
        %v1377 = vsel %vm1083, %v1151, %v1249
        %v1378 = vsel %vm1083, %v1153, %v1251
        %v1379 = vsel %vm1083, %v1155, %v1253
        %v1380 = vsel %vm1083, %v1157, %v1255
        %v1381 = vsel %vm1083, %v1159, %v1257
        %v1382 = vsel %vm1083, %v1161, %v1259
        %v1383 = vsel %vm1083, %v1163, %v1261
        %v1384 = vsel %vm1083, %v1165, %v1263
        %v1385 = vsel %vm1083, %v1167, %v1265
        %v1386 = vsel %vm1083, %v1169, %v1267
        %v1387 = vsel %vm1083, %v1171, %v1269
        %v1388 = vsel %vm1083, %v1173, %v1271
        %v1389 = vsel %vm1083, %v1175, %v1273
        %v1390 = vsel %vm1083, %v1177, %v1275
        %v1391 = vsel %vm1083, %v1179, %v1277
        %v1392 = vsel %vm1083, %v1181, %v1279
        %v1393 = vsel %vm1083, %v1183, %v1281
        %v1394 = vsel %vm1083, %v1185, %v1283
        %v1395 = vsel %vm1083, %v1187, %v1285
        %v1396 = vsel %vm1083, %v1189, %v1287
        %v1397 = vsel %vm1083, %v1191, %v1289
        %v1398 = vsel %vm1083, %v1193, %v1291
        %v1399 = vsel %vm1083, %v1195, %v1293
        %v1400 = vsel %vm1083, %v1197, %v1295
        %v1401 = vsel %vm1083, %v1199, %v1297
        %v1402 = vsel %vm1083, %v1201, %v1299
        %v1403 = vsel %vm1083, %v1203, %v1301
        %v1404 = vsel %vm1083, %v1205, %v1303
        %v1405 = vsel %vm1083, %v1207, %v1305
        %v1406 = vsel %vm1083, %v1209, %v1307
        %v1407 = vsel %vm1083, %v1211, %v1309
        %v1408 = vsel %vm1083, %v1213, %v1311
        %v1409 = vpack.c.bf16 %v1346, %v1345
        %v1410 = vpack.c.bf16 %v1378, %v1377
        %v1411 = vpack.c.bf16 %v1251, %v1249
        %v1412 = vpack.c.bf16 %v1348, %v1347
        %v1413 = vpack.c.bf16 %v1380, %v1379
        %v1414 = vpack.c.bf16 %v1255, %v1253
        %v1415 = vpack.c.bf16 %v1350, %v1349
        %v1416 = vpack.c.bf16 %v1382, %v1381
        %v1417 = vpack.c.bf16 %v1259, %v1257
        %v1418 = vpack.c.bf16 %v1352, %v1351
        %v1419 = vpack.c.bf16 %v1384, %v1383
        %v1420 = vpack.c.bf16 %v1263, %v1261
        %v1421 = vpack.c.bf16 %v1354, %v1353
        %v1422 = vpack.c.bf16 %v1386, %v1385
        %v1423 = vpack.c.bf16 %v1267, %v1265
        %v1424 = vpack.c.bf16 %v1356, %v1355
        %v1425 = vpack.c.bf16 %v1388, %v1387
        %v1426 = vpack.c.bf16 %v1271, %v1269
        %v1427 = vpack.c.bf16 %v1358, %v1357
        %v1428 = vpack.c.bf16 %v1390, %v1389
        %v1429 = vpack.c.bf16 %v1275, %v1273
        %v1430 = vpack.c.bf16 %v1360, %v1359
        %v1431 = vpack.c.bf16 %v1392, %v1391
        %v1432 = vpack.c.bf16 %v1279, %v1277
        %v1433 = vpack.c.bf16 %v1362, %v1361
        %v1434 = vpack.c.bf16 %v1394, %v1393
        %v1435 = vpack.c.bf16 %v1283, %v1281
        %v1436 = vpack.c.bf16 %v1364, %v1363
        %v1437 = vpack.c.bf16 %v1396, %v1395
        %v1438 = vpack.c.bf16 %v1287, %v1285
        %v1439 = vpack.c.bf16 %v1366, %v1365
        %v1440 = vpack.c.bf16 %v1398, %v1397
        %v1441 = vpack.c.bf16 %v1291, %v1289
        %v1442 = vpack.c.bf16 %v1368, %v1367
        %v1443 = vpack.c.bf16 %v1400, %v1399
        %v1444 = vpack.c.bf16 %v1295, %v1293
        %v1445 = vpack.c.bf16 %v1370, %v1369
        %v1446 = vpack.c.bf16 %v1402, %v1401
        %v1447 = vpack.c.bf16 %v1299, %v1297
        %v1448 = vpack.c.bf16 %v1372, %v1371
        %v1449 = vpack.c.bf16 %v1404, %v1403
        %v1450 = vpack.c.bf16 %v1303, %v1301
        %v1451 = vpack.c.bf16 %v1374, %v1373
        %v1452 = vpack.c.bf16 %v1406, %v1405
        %v1453 = vpack.c.bf16 %v1307, %v1305
        %v1454 = vpack.c.bf16 %v1376, %v1375
        %v1455 = vpack.c.bf16 %v1408, %v1407
        %v1456 = vpack.c.bf16 %v1311, %v1309
        %v1457 = vld [vmem:[%s2] sm:$0xf]
        %v1458 = vld [vmem:[%s2 + $0x4] sm:$0xf]
        %v1459 = vld [vmem:[%s2 + $0x8] sm:$0xf]
        %v1460 = vld [vmem:[%s2 + $0xc] sm:$0xf]
        %v1461 = vld [vmem:[%s2 + $0x10] sm:$0xf]
        %v1462 = vld [vmem:[%s2 + $0x14] sm:$0xf]
        %v1463 = vld [vmem:[%s2 + $0x18] sm:$0xf]
        %v1464 = vld [vmem:[%s2 + $0x1c] sm:$0xf]
        %v1465 = vld [vmem:[%s2 + $0x20] sm:$0xf]
        %v1466 = vld [vmem:[%s2 + $0x24] sm:$0xf]
        %v1467 = vld [vmem:[%s2 + $0x28] sm:$0xf]
        %v1468 = vld [vmem:[%s2 + $0x2c] sm:$0xf]
        %v1469 = vld [vmem:[%s2 + $0x30] sm:$0xf]
        %v1470 = vld [vmem:[%s2 + $0x34] sm:$0xf]
        %v1471 = vld [vmem:[%s2 + $0x38] sm:$0xf]
        %v1472 = vld [vmem:[%s2 + $0x3c] sm:$0xf]
        %v1473 = vld [vmem:[%s2 + $0x40] sm:$0xf]
        %v1474 = vld [vmem:[%s2 + $0x44] sm:$0xf]
        %v1475 = vld [vmem:[%s2 + $0x48] sm:$0xf]
        %v1476 = vld [vmem:[%s2 + $0x4c] sm:$0xf]
        %v1477 = vld [vmem:[%s2 + $0x50] sm:$0xf]
        %v1478 = vld [vmem:[%s2 + $0x54] sm:$0xf]
        %v1479 = vld [vmem:[%s2 + $0x58] sm:$0xf]
        %v1480 = vld [vmem:[%s2 + $0x5c] sm:$0xf]
        %v1481 = vld [vmem:[%s2 + $0x60] sm:$0xf]
        %v1482 = vld [vmem:[%s2 + $0x64] sm:$0xf]
        %v1483 = vld [vmem:[%s2 + $0x68] sm:$0xf]
        %v1484 = vld [vmem:[%s2 + $0x6c] sm:$0xf]
        %v1485 = vld [vmem:[%s2 + $0x70] sm:$0xf]
        %v1486 = vld [vmem:[%s2 + $0x74] sm:$0xf]
        %v1487 = vld [vmem:[%s2 + $0x78] sm:$0xf]
        %v1488 = vld [vmem:[%s2 + $0x7c] sm:$0xf]
        %v1489 = vld [vmem:[%s2 + $0x80] sm:$0xf]
        %v1490 = vld [vmem:[%s2 + $0x84] sm:$0xf]
        %v1491 = vld [vmem:[%s2 + $0x88] sm:$0xf]
        %v1492 = vld [vmem:[%s2 + $0x8c] sm:$0xf]
        %v1493 = vld [vmem:[%s5] sm:$0x1]
        %v1495 = vlaneseq
        %v1496 = vshrl.u32 %v1495, 7
        %v1497 = vsub.s32 0, %v1496
        %v1498 = vrot.slane %v1493, %v1497
        %v1536 = vunpack.c.l.b16 %v1457
        %v1537 = vunpack.c.l.b16 %v1458
        %v1538 = vunpack.c.l.b16 %v1459
        %v1539 = vunpack.c.l.b16 %v1460
        %v1540 = vunpack.c.l.b16 %v1461
        %v1541 = vunpack.c.l.b16 %v1462
        %v1542 = vunpack.c.l.b16 %v1463
        %v1543 = vunpack.c.l.b16 %v1464
        %v1544 = vunpack.c.l.b16 %v1465
        %v1545 = vunpack.c.l.b16 %v1466
        %v1546 = vunpack.c.l.b16 %v1467
        %v1547 = vunpack.c.l.b16 %v1468
        %v1548 = vunpack.c.l.b16 %v1469
        %v1549 = vunpack.c.l.b16 %v1470
        %v1550 = vunpack.c.l.b16 %v1471
        %v1551 = vunpack.c.l.b16 %v1472
        %v1552 = vunpack.c.l.b16 %v1473
        %v1553 = vunpack.c.l.b16 %v1474
        %v1554 = vunpack.c.l.b16 %v1475
        %v1555 = vunpack.c.l.b16 %v1476
        %v1556 = vunpack.c.l.b16 %v1477
        %v1557 = vunpack.c.l.b16 %v1478
        %v1558 = vunpack.c.l.b16 %v1479
        %v1559 = vunpack.c.l.b16 %v1480
        %v1560 = vunpack.c.l.b16 %v1481
        %v1561 = vunpack.c.l.b16 %v1482
        %v1562 = vunpack.c.l.b16 %v1483
        %v1563 = vunpack.c.l.b16 %v1484
        %v1564 = vunpack.c.l.b16 %v1485
        %v1565 = vunpack.c.l.b16 %v1486
        %v1566 = vunpack.c.l.b16 %v1487
        %v1567 = vunpack.c.l.b16 %v1488
        %v1568 = vunpack.c.l.b16 %v1489
        %v1569 = vunpack.c.l.b16 %v1490
        %v1570 = vunpack.c.l.b16 %v1491
        %v1571 = vunpack.c.l.b16 %v1492
        %v1572 = vpack.c.b16 %v1537, %v1536
        %v1573 = vpack.c.b16 %v1539, %v1538
        %v1574 = vpack.c.b16 %v1541, %v1540
        %v1575 = vpack.c.b16 %v1543, %v1542
        %v1576 = vpack.c.b16 %v1545, %v1544
        %v1577 = vpack.c.b16 %v1547, %v1546
        %v1578 = vpack.c.b16 %v1549, %v1548
        %v1579 = vpack.c.b16 %v1551, %v1550
        %v1580 = vpack.c.b16 %v1553, %v1552
        %v1581 = vpack.c.b16 %v1555, %v1554
        %v1582 = vpack.c.b16 %v1557, %v1556
        %v1583 = vpack.c.b16 %v1559, %v1558
        %v1584 = vpack.c.b16 %v1561, %v1560
        %v1585 = vpack.c.b16 %v1563, %v1562
        %v1586 = vpack.c.b16 %v1565, %v1564
        %v1587 = vpack.c.b16 %v1567, %v1566
        %v1588 = vpack.c.b16 %v1569, %v1568
        %v1589 = vpack.c.b16 %v1571, %v1570
        %v1609 = vsel %vm1048, %v1411, 0
        %v1612 = vsel %vm1048, %v1414, 0
        %v1615 = vsel %vm1048, %v1417, 0
        %v1618 = vsel %vm1048, %v1420, 0
        %v1621 = vsel %vm1048, %v1423, 0
        %v1624 = vsel %vm1048, %v1426, 0
        %v1627 = vsel %vm1048, %v1429, 0
        %v1630 = vsel %vm1048, %v1432, 0
        %v1633 = vsel %vm1048, %v1435, 0
        %v1636 = vsel %vm1048, %v1438, 0
        %v1639 = vsel %vm1048, %v1441, 0
        %v1642 = vsel %vm1048, %v1444, 0
        %v1645 = vsel %vm1048, %v1447, 0
        %v1648 = vsel %vm1048, %v1450, 0
        %v1651 = vsel %vm1048, %v1453, 0
        %v1654 = vsel %vm1048, %v1456, 0
        %1656 = vmatprep.subr.bf16.mxu0 0
        %1657 = vmatpush1.bf16.msra.mxu0 %v1572
        %1658 = vmatprep.subr.bf16.mxu0 0
        %1659 = vmatpush1.bf16.msra.mxu0 %v1573
        %1660 = vmatprep.subr.bf16.mxu0 0
        %1661 = vmatpush1.bf16.msra.mxu0 %v1574
        %1662 = vmatprep.subr.bf16.mxu0 0
        %1663 = vmatpush1.bf16.msra.mxu0 %v1575
        %1664 = vmatprep.subr.bf16.mxu0 0
        %1665 = vmatpush1.bf16.msra.mxu0 %v1576
        %1666 = vmatprep.subr.bf16.mxu0 0
        %1667 = vmatpush1.bf16.msra.mxu0 %v1577
        %1668 = vmatprep.subr.bf16.mxu0 0
        %1669 = vmatpush1.bf16.msra.mxu0 %v1578
        %1670 = vmatprep.subr.bf16.mxu0 0
        %1671 = vmatpush1.bf16.msra.mxu0 %v1579
        %1672 = vmatprep.subr.bf16.mxu0 0
        %1673 = vmatpush1.bf16.msra.mxu0 %v1580
        %1674 = vmatprep.subr.bf16.mxu0 0
        %1675 = vmatpush1.bf16.msra.mxu0 %v1581
        %1676 = vmatprep.subr.bf16.mxu0 0
        %1677 = vmatpush1.bf16.msra.mxu0 %v1582
        %1678 = vmatprep.subr.bf16.mxu0 0
        %1679 = vmatpush1.bf16.msra.mxu0 %v1583
        %1680 = vmatprep.subr.bf16.mxu0 0
        %1681 = vmatpush1.bf16.msra.mxu0 %v1584
        %1682 = vmatprep.subr.bf16.mxu0 0
        %1683 = vmatpush1.bf16.msra.mxu0 %v1585
        %1684 = vmatprep.subr.bf16.mxu0 0
        %1685 = vmatpush1.bf16.msra.mxu0 %v1586
        %1686 = vmatprep.subr.bf16.mxu0 0
        %1687 = vmatpush1.bf16.msra.mxu0 %v1587
        %1688 = vmatprep.mubr.bf16.mxu0 %v1410
        %1689 = vmatmul.mubr.bf16.gmra.mrb[0].mxu0 %v1409
        %v1690 = vpop.f32.mrb[0].mxu0
        %v1691 = vadd.f32 %v1498, %v1690
        %v1692 = vpop.f32.mrb[0].mxu0
        %v1693 = vpop.f32.mrb[0].mxu0
        %v1694 = vadd.f32 %v1498, %v1693
        %v1695 = vpop.f32.mrb[0].mxu0
        %1696 = vmatprep.mubr.bf16.mxu0 %v1413
        %1697 = vmatmul.mubr.bf16.gmra.mrb[0].mxu0 %v1412
        %v1698 = vpop.f32.mrb[0].mxu0
        %v1699 = vadd.f32 %v1498, %v1698
        %v1700 = vpop.f32.mrb[0].mxu0
        %v1701 = vpop.f32.mrb[0].mxu0
        %v1702 = vadd.f32 %v1498, %v1701
        %v1703 = vpop.f32.mrb[0].mxu0
        %1704 = vmatprep.mubr.bf16.mxu0 %v1416
        %1705 = vmatmul.mubr.bf16.gmra.mrb[0].mxu0 %v1415
        %v1706 = vpop.f32.mrb[0].mxu0
        %v1707 = vadd.f32 %v1498, %v1706
        %v1708 = vpop.f32.mrb[0].mxu0
        %v1709 = vpop.f32.mrb[0].mxu0
        %v1710 = vadd.f32 %v1498, %v1709
        %v1711 = vpop.f32.mrb[0].mxu0
        %1712 = vmatprep.mubr.bf16.mxu0 %v1419
        %1713 = vmatmul.mubr.bf16.gmra.mrb[0].mxu0 %v1418
        %v1714 = vpop.f32.mrb[0].mxu0
        %v1715 = vadd.f32 %v1498, %v1714
        %v1716 = vpop.f32.mrb[0].mxu0
        %v1717 = vpop.f32.mrb[0].mxu0
        %v1718 = vadd.f32 %v1498, %v1717
        %v1719 = vpop.f32.mrb[0].mxu0
        %1720 = vmatprep.mubr.bf16.mxu0 %v1422
        %1721 = vmatmul.mubr.bf16.gmra.mrb[0].mxu0 %v1421
        %v1722 = vpop.f32.mrb[0].mxu0
        %v1723 = vadd.f32 %v1498, %v1722
        %v1724 = vpop.f32.mrb[0].mxu0
        %v1725 = vpop.f32.mrb[0].mxu0
        %v1726 = vadd.f32 %v1498, %v1725
        %v1727 = vpop.f32.mrb[0].mxu0
        %1728 = vmatprep.mubr.bf16.mxu0 %v1425
        %1729 = vmatmul.mubr.bf16.gmra.mrb[0].mxu0 %v1424
        %v1730 = vpop.f32.mrb[0].mxu0
        %v1731 = vadd.f32 %v1498, %v1730
        %v1732 = vpop.f32.mrb[0].mxu0
        %v1733 = vpop.f32.mrb[0].mxu0
        %v1734 = vadd.f32 %v1498, %v1733
        %v1735 = vpop.f32.mrb[0].mxu0
        %1736 = vmatprep.mubr.bf16.mxu0 %v1428
        %1737 = vmatmul.mubr.bf16.gmra.mrb[0].mxu0 %v1427
        %v1738 = vpop.f32.mrb[0].mxu0
        %v1739 = vadd.f32 %v1498, %v1738
        %v1740 = vpop.f32.mrb[0].mxu0
        %v1741 = vpop.f32.mrb[0].mxu0
        %v1742 = vadd.f32 %v1498, %v1741
        %v1743 = vpop.f32.mrb[0].mxu0
        %1744 = vmatprep.mubr.bf16.mxu0 %v1431
        %1745 = vmatmul.mubr.bf16.gmra.mrb[0].mxu0 %v1430
        %v1746 = vpop.f32.mrb[0].mxu0
        %v1747 = vadd.f32 %v1498, %v1746
        %v1748 = vpop.f32.mrb[0].mxu0
        %v1749 = vpop.f32.mrb[0].mxu0
        %v1750 = vadd.f32 %v1498, %v1749
        %v1751 = vpop.f32.mrb[0].mxu0
        %1752 = vmatprep.mubr.bf16.mxu0 %v1434
        %1753 = vmatmul.mubr.bf16.gmra.mrb[0].mxu0 %v1433
        %v1754 = vpop.f32.mrb[0].mxu0
        %v1755 = vadd.f32 %v1498, %v1754
        %v1756 = vpop.f32.mrb[0].mxu0
        %v1757 = vpop.f32.mrb[0].mxu0
        %v1758 = vadd.f32 %v1498, %v1757
        %v1759 = vpop.f32.mrb[0].mxu0
        %1760 = vmatprep.mubr.bf16.mxu0 %v1437
        %1761 = vmatmul.mubr.bf16.gmra.mrb[0].mxu0 %v1436
        %v1762 = vpop.f32.mrb[0].mxu0
        %v1763 = vadd.f32 %v1498, %v1762
        %v1764 = vpop.f32.mrb[0].mxu0
        %v1765 = vpop.f32.mrb[0].mxu0
        %v1766 = vadd.f32 %v1498, %v1765
        %v1767 = vpop.f32.mrb[0].mxu0
        %1768 = vmatprep.mubr.bf16.mxu0 %v1440
        %1769 = vmatmul.mubr.bf16.gmra.mrb[0].mxu0 %v1439
        %v1770 = vpop.f32.mrb[0].mxu0
        %v1771 = vadd.f32 %v1498, %v1770
        %v1772 = vpop.f32.mrb[0].mxu0
        %v1773 = vpop.f32.mrb[0].mxu0
        %v1774 = vadd.f32 %v1498, %v1773
        %v1775 = vpop.f32.mrb[0].mxu0
        %1776 = vmatprep.mubr.bf16.mxu0 %v1443
        %1777 = vmatmul.mubr.bf16.gmra.mrb[0].mxu0 %v1442
        %v1778 = vpop.f32.mrb[0].mxu0
        %v1779 = vadd.f32 %v1498, %v1778
        %v1780 = vpop.f32.mrb[0].mxu0
        %v1781 = vpop.f32.mrb[0].mxu0
        %v1782 = vadd.f32 %v1498, %v1781
        %v1783 = vpop.f32.mrb[0].mxu0
        %1784 = vmatprep.mubr.bf16.mxu0 %v1446
        %1785 = vmatmul.mubr.bf16.gmra.mrb[0].mxu0 %v1445
        %v1786 = vpop.f32.mrb[0].mxu0
        %v1787 = vadd.f32 %v1498, %v1786
        %v1788 = vpop.f32.mrb[0].mxu0
        %v1789 = vpop.f32.mrb[0].mxu0
        %v1790 = vadd.f32 %v1498, %v1789
        %v1791 = vpop.f32.mrb[0].mxu0
        %1792 = vmatprep.mubr.bf16.mxu0 %v1449
        %1793 = vmatmul.mubr.bf16.gmra.mrb[0].mxu0 %v1448
        %v1794 = vpop.f32.mrb[0].mxu0
        %v1795 = vadd.f32 %v1498, %v1794
        %v1796 = vpop.f32.mrb[0].mxu0
        %v1797 = vpop.f32.mrb[0].mxu0
        %v1798 = vadd.f32 %v1498, %v1797
        %v1799 = vpop.f32.mrb[0].mxu0
        %1800 = vmatprep.mubr.bf16.mxu0 %v1452
        %1801 = vmatmul.mubr.bf16.gmra.mrb[0].mxu0 %v1451
        %v1802 = vpop.f32.mrb[0].mxu0
        %v1803 = vadd.f32 %v1498, %v1802
        %v1804 = vpop.f32.mrb[0].mxu0
        %v1805 = vpop.f32.mrb[0].mxu0
        %v1806 = vadd.f32 %v1498, %v1805
        %v1807 = vpop.f32.mrb[0].mxu0
        %1808 = vmatprep.mubr.bf16.mxu0 %v1455
        %1809 = vmatmul.mubr.bf16.gmra.mrb[0].mxu0 %v1454
        %v1810 = vpop.f32.mrb[0].mxu0
        %v1811 = vadd.f32 %v1498, %v1810
        %v1812 = vpop.f32.mrb[0].mxu0
        %v1813 = vpop.f32.mrb[0].mxu0
        %v1814 = vadd.f32 %v1498, %v1813
        %v1815 = vpop.f32.mrb[0].mxu0
        %1816 = vdwg.mxu0
        %1817 = vmatprep.subr.bf16.mxu0 0
        %1818 = vmatpush1.bf16.msra.mxu0 %v1588
        %1819 = vmatprep.subr.bf16.mxu0 0
        %1820 = vmatpush1.bf16.msra.mxu0 %v1589
        %1821 = vmatprep.subr.bf16.mxu0 0
        %1822 = vmatpush1.bf16.msra.mxu0 0
        %1823 = vmatprep.subr.bf16.mxu0 0
        %1824 = vmatpush1.bf16.msra.mxu0 0
        %1825 = vmatprep.subr.bf16.mxu0 0
        %1826 = vmatpush1.bf16.msra.mxu0 0
        %1827 = vmatprep.subr.bf16.mxu0 0
        %1828 = vmatpush1.bf16.msra.mxu0 0
        %1829 = vmatprep.subr.bf16.mxu0 0
        %1830 = vmatpush1.bf16.msra.mxu0 0
        %1831 = vmatprep.subr.bf16.mxu0 0
        %1832 = vmatpush1.bf16.msra.mxu0 0
        %1833 = vmatprep.subr.bf16.mxu0 0
        %1834 = vmatpush1.bf16.msra.mxu0 0
        %1835 = vmatprep.subr.bf16.mxu0 0
        %1836 = vmatpush1.bf16.msra.mxu0 0
        %1837 = vmatprep.subr.bf16.mxu0 0
        %1838 = vmatpush1.bf16.msra.mxu0 0
        %1839 = vmatprep.subr.bf16.mxu0 0
        %1840 = vmatpush1.bf16.msra.mxu0 0
        %1841 = vmatprep.subr.bf16.mxu0 0
        %1842 = vmatpush1.bf16.msra.mxu0 0
        %1843 = vmatprep.subr.bf16.mxu0 0
        %1844 = vmatpush1.bf16.msra.mxu0 0
        %1845 = vmatprep.subr.bf16.mxu0 0
        %1846 = vmatpush1.bf16.msra.mxu0 0
        %1847 = vmatprep.subr.bf16.mxu0 0
        %1848 = vmatpush1.bf16.msra.mxu0 0
        %1849 = vmatprep.mubr.bf16.mxu0 0
        %1850 = vmatmul.mubr.bf16.gmra.mrb[0].mxu0 %v1609
        %v1851 = vpop.f32.mrb[0].mxu0
        %v1852 = vadd.f32 %v1691, %v1851
        %v1853 = vpop.f32.mrb[0].mxu0
        %v1854 = vpop.f32.mrb[0].mxu0
        %v1855 = vadd.f32 %v1694, %v1854
        %v1856 = vpop.f32.mrb[0].mxu0
        %1857 = vmatprep.mubr.bf16.mxu0 0
        %1858 = vmatmul.mubr.bf16.gmra.mrb[0].mxu0 %v1612
        %v1859 = vpop.f32.mrb[0].mxu0
        %v1860 = vadd.f32 %v1699, %v1859
        %v1861 = vpop.f32.mrb[0].mxu0
        %v1862 = vpop.f32.mrb[0].mxu0
        %v1863 = vadd.f32 %v1702, %v1862
        %v1864 = vpop.f32.mrb[0].mxu0
        %1865 = vmatprep.mubr.bf16.mxu0 0
        %1866 = vmatmul.mubr.bf16.gmra.mrb[0].mxu0 %v1615
        %v1867 = vpop.f32.mrb[0].mxu0
        %v1868 = vadd.f32 %v1707, %v1867
        %v1869 = vpop.f32.mrb[0].mxu0
        %v1870 = vpop.f32.mrb[0].mxu0
        %v1871 = vadd.f32 %v1710, %v1870
        %v1872 = vpop.f32.mrb[0].mxu0
        %1873 = vmatprep.mubr.bf16.mxu0 0
        %1874 = vmatmul.mubr.bf16.gmra.mrb[0].mxu0 %v1618
        %v1875 = vpop.f32.mrb[0].mxu0
        %v1876 = vadd.f32 %v1715, %v1875
        %v1877 = vpop.f32.mrb[0].mxu0
        %v1878 = vpop.f32.mrb[0].mxu0
        %v1879 = vadd.f32 %v1718, %v1878
        %v1880 = vpop.f32.mrb[0].mxu0
        %1881 = vmatprep.mubr.bf16.mxu0 0
        %1882 = vmatmul.mubr.bf16.gmra.mrb[0].mxu0 %v1621
        %v1883 = vpop.f32.mrb[0].mxu0
        %v1884 = vadd.f32 %v1723, %v1883
        %v1885 = vpop.f32.mrb[0].mxu0
        %v1886 = vpop.f32.mrb[0].mxu0
        %v1887 = vadd.f32 %v1726, %v1886
        %v1888 = vpop.f32.mrb[0].mxu0
        %1889 = vmatprep.mubr.bf16.mxu0 0
        %1890 = vmatmul.mubr.bf16.gmra.mrb[0].mxu0 %v1624
        %v1891 = vpop.f32.mrb[0].mxu0
        %v1892 = vadd.f32 %v1731, %v1891
        %v1893 = vpop.f32.mrb[0].mxu0
        %v1894 = vpop.f32.mrb[0].mxu0
        %v1895 = vadd.f32 %v1734, %v1894
        %v1896 = vpop.f32.mrb[0].mxu0
        %1897 = vmatprep.mubr.bf16.mxu0 0
        %1898 = vmatmul.mubr.bf16.gmra.mrb[0].mxu0 %v1627
        %v1899 = vpop.f32.mrb[0].mxu0
        %v1900 = vadd.f32 %v1739, %v1899
        %v1901 = vpop.f32.mrb[0].mxu0
        %v1902 = vpop.f32.mrb[0].mxu0
        %v1903 = vadd.f32 %v1742, %v1902
        %v1904 = vpop.f32.mrb[0].mxu0
        %1905 = vmatprep.mubr.bf16.mxu0 0
        %1906 = vmatmul.mubr.bf16.gmra.mrb[0].mxu0 %v1630
        %v1907 = vpop.f32.mrb[0].mxu0
        %v1908 = vadd.f32 %v1747, %v1907
        %v1909 = vpop.f32.mrb[0].mxu0
        %v1910 = vpop.f32.mrb[0].mxu0
        %v1911 = vadd.f32 %v1750, %v1910
        %v1912 = vpop.f32.mrb[0].mxu0
        %1913 = vmatprep.mubr.bf16.mxu0 0
        %1914 = vmatmul.mubr.bf16.gmra.mrb[0].mxu0 %v1633
        %v1915 = vpop.f32.mrb[0].mxu0
        %v1916 = vadd.f32 %v1755, %v1915
        %v1917 = vpop.f32.mrb[0].mxu0
        %v1918 = vpop.f32.mrb[0].mxu0
        %v1919 = vadd.f32 %v1758, %v1918
        %v1920 = vpop.f32.mrb[0].mxu0
        %1921 = vmatprep.mubr.bf16.mxu0 0
        %1922 = vmatmul.mubr.bf16.gmra.mrb[0].mxu0 %v1636
        %v1923 = vpop.f32.mrb[0].mxu0
        %v1924 = vadd.f32 %v1763, %v1923
        %v1925 = vpop.f32.mrb[0].mxu0
        %v1926 = vpop.f32.mrb[0].mxu0
        %v1927 = vadd.f32 %v1766, %v1926
        %v1928 = vpop.f32.mrb[0].mxu0
        %1929 = vmatprep.mubr.bf16.mxu0 0
        %1930 = vmatmul.mubr.bf16.gmra.mrb[0].mxu0 %v1639
        %v1931 = vpop.f32.mrb[0].mxu0
        %v1932 = vadd.f32 %v1771, %v1931
        %v1933 = vpop.f32.mrb[0].mxu0
        %v1934 = vpop.f32.mrb[0].mxu0
        %v1935 = vadd.f32 %v1774, %v1934
        %v1936 = vpop.f32.mrb[0].mxu0
        %1937 = vmatprep.mubr.bf16.mxu0 0
        %1938 = vmatmul.mubr.bf16.gmra.mrb[0].mxu0 %v1642
        %v1939 = vpop.f32.mrb[0].mxu0
        %v1940 = vadd.f32 %v1779, %v1939
        %v1941 = vpop.f32.mrb[0].mxu0
        %v1942 = vpop.f32.mrb[0].mxu0
        %v1943 = vadd.f32 %v1782, %v1942
        %v1944 = vpop.f32.mrb[0].mxu0
        %1945 = vmatprep.mubr.bf16.mxu0 0
        %1946 = vmatmul.mubr.bf16.gmra.mrb[0].mxu0 %v1645
        %v1947 = vpop.f32.mrb[0].mxu0
        %v1948 = vadd.f32 %v1787, %v1947
        %v1949 = vpop.f32.mrb[0].mxu0
        %v1950 = vpop.f32.mrb[0].mxu0
        %v1951 = vadd.f32 %v1790, %v1950
        %v1952 = vpop.f32.mrb[0].mxu0
        %1953 = vmatprep.mubr.bf16.mxu0 0
        %1954 = vmatmul.mubr.bf16.gmra.mrb[0].mxu0 %v1648
        %v1955 = vpop.f32.mrb[0].mxu0
        %v1956 = vadd.f32 %v1795, %v1955
        %v1957 = vpop.f32.mrb[0].mxu0
        %v1958 = vpop.f32.mrb[0].mxu0
        %v1959 = vadd.f32 %v1798, %v1958
        %v1960 = vpop.f32.mrb[0].mxu0
        %1961 = vmatprep.mubr.bf16.mxu0 0
        %1962 = vmatmul.mubr.bf16.gmra.mrb[0].mxu0 %v1651
        %v1963 = vpop.f32.mrb[0].mxu0
        %v1964 = vadd.f32 %v1803, %v1963
        %v1965 = vpop.f32.mrb[0].mxu0
        %v1966 = vpop.f32.mrb[0].mxu0
        %v1967 = vadd.f32 %v1806, %v1966
        %v1968 = vpop.f32.mrb[0].mxu0
        %1969 = vmatprep.mubr.bf16.mxu0 0
        %1970 = vmatmul.mubr.bf16.gmra.mrb[0].mxu0 %v1654
        %v1971 = vpop.f32.mrb[0].mxu0
        %v1972 = vadd.f32 %v1811, %v1971
        %v1973 = vpop.f32.mrb[0].mxu0
        %v1974 = vpop.f32.mrb[0].mxu0
        %v1975 = vadd.f32 %v1814, %v1974
        %v1976 = vpop.f32.mrb[0].mxu0
        %1977 = vdwg.mxu0
        %v1978 = vmax.f32 %v1852, 0.0
        %v1979 = vmax.f32 %v1855, 0.0
        %v1980 = vmax.f32 %v1860, 0.0
        %v1981 = vmax.f32 %v1863, 0.0
        %v1982 = vmax.f32 %v1868, 0.0
        %v1983 = vmax.f32 %v1871, 0.0
        %v1984 = vmax.f32 %v1876, 0.0
        %v1985 = vmax.f32 %v1879, 0.0
        %v1986 = vmax.f32 %v1884, 0.0
        %v1987 = vmax.f32 %v1887, 0.0
        %v1988 = vmax.f32 %v1892, 0.0
        %v1989 = vmax.f32 %v1895, 0.0
        %v1990 = vmax.f32 %v1900, 0.0
        %v1991 = vmax.f32 %v1903, 0.0
        %v1992 = vmax.f32 %v1908, 0.0
        %v1993 = vmax.f32 %v1911, 0.0
        %v1994 = vmax.f32 %v1916, 0.0
        %v1995 = vmax.f32 %v1919, 0.0
        %v1996 = vmax.f32 %v1924, 0.0
        %v1997 = vmax.f32 %v1927, 0.0
        %v1998 = vmax.f32 %v1932, 0.0
        %v1999 = vmax.f32 %v1935, 0.0
        %v2000 = vmax.f32 %v1940, 0.0
        %v2001 = vmax.f32 %v1943, 0.0
        %v2002 = vmax.f32 %v1948, 0.0
        %v2003 = vmax.f32 %v1951, 0.0
        %v2004 = vmax.f32 %v1956, 0.0
        %v2005 = vmax.f32 %v1959, 0.0
        %v2006 = vmax.f32 %v1964, 0.0
        %v2007 = vmax.f32 %v1967, 0.0
        %v2008 = vmax.f32 %v1972, 0.0
        %v2009 = vmax.f32 %v1975, 0.0
        %v2010 = vpack.c.bf16 %v1979, %v1978
        %v2011 = vpack.c.bf16 %v1981, %v1980
        %v2012 = vpack.c.bf16 %v1983, %v1982
        %v2013 = vpack.c.bf16 %v1985, %v1984
        %v2014 = vpack.c.bf16 %v1987, %v1986
        %v2015 = vpack.c.bf16 %v1989, %v1988
        %v2016 = vpack.c.bf16 %v1991, %v1990
        %v2017 = vpack.c.bf16 %v1993, %v1992
        %v2018 = vpack.c.bf16 %v1995, %v1994
        %v2019 = vpack.c.bf16 %v1997, %v1996
        %v2020 = vpack.c.bf16 %v1999, %v1998
        %v2021 = vpack.c.bf16 %v2001, %v2000
        %v2022 = vpack.c.bf16 %v2003, %v2002
        %v2023 = vpack.c.bf16 %v2005, %v2004
        %v2024 = vpack.c.bf16 %v2007, %v2006
        %v2025 = vpack.c.bf16 %v2009, %v2008
        %v2026 = vld [vmem:[%s3] sm:$0xf]
        %v2027 = vld [vmem:[%s3 + $0x4] sm:$0xf]
        %v2028 = vld [vmem:[%s3 + $0x8] sm:$0xf]
        %v2029 = vld [vmem:[%s3 + $0xc] sm:$0xf]
        %v2030 = vld [vmem:[%s6] sm:$0x1]
        %v2032 = vlaneseq
        %v2033 = vshrl.u32 %v2032, 7
        %v2034 = vsub.s32 0, %v2033
        %v2035 = vrot.slane %v2030, %v2034
        %v2041 = vunpack.c.l.b16 %v2026
        %v2042 = vunpack.c.l.b16 %v2027
        %v2043 = vunpack.c.l.b16 %v2028
        %v2044 = vunpack.c.l.b16 %v2029
        %v2045 = vpack.c.b16 %v2042, %v2041
        %v2046 = vpack.c.b16 %v2044, %v2043
        %v2050 = vsel %vm1048, %v2010, 0
        %v2053 = vsel %vm1048, %v2011, 0
        %v2056 = vsel %vm1048, %v2012, 0
        %v2059 = vsel %vm1048, %v2013, 0
        %v2062 = vsel %vm1048, %v2014, 0
        %v2065 = vsel %vm1048, %v2015, 0
        %v2068 = vsel %vm1048, %v2016, 0
        %v2071 = vsel %vm1048, %v2017, 0
        %v2074 = vsel %vm1048, %v2018, 0
        %v2077 = vsel %vm1048, %v2019, 0
        %v2080 = vsel %vm1048, %v2020, 0
        %v2083 = vsel %vm1048, %v2021, 0
        %v2086 = vsel %vm1048, %v2022, 0
        %v2089 = vsel %vm1048, %v2023, 0
        %v2092 = vsel %vm1048, %v2024, 0
        %v2095 = vsel %vm1048, %v2025, 0
        %2097 = vmatprep.subr.bf16.mxu0 0
        %2098 = vmatpush1.bf16.msra.mxu0 %v2045
        %2099 = vmatprep.subr.bf16.mxu0 0
        %2100 = vmatpush1.bf16.msra.mxu0 %v2046
        %2101 = vmatprep.subr.bf16.mxu0 0
        %2102 = vmatpush1.bf16.msra.mxu0 0
        %2103 = vmatprep.subr.bf16.mxu0 0
        %2104 = vmatpush1.bf16.msra.mxu0 0
        %2105 = vmatprep.subr.bf16.mxu0 0
        %2106 = vmatpush1.bf16.msra.mxu0 0
        %2107 = vmatprep.subr.bf16.mxu0 0
        %2108 = vmatpush1.bf16.msra.mxu0 0
        %2109 = vmatprep.subr.bf16.mxu0 0
        %2110 = vmatpush1.bf16.msra.mxu0 0
        %2111 = vmatprep.subr.bf16.mxu0 0
        %2112 = vmatpush1.bf16.msra.mxu0 0
        %2113 = vmatprep.subr.bf16.mxu0 0
        %2114 = vmatpush1.bf16.msra.mxu0 0
        %2115 = vmatprep.subr.bf16.mxu0 0
        %2116 = vmatpush1.bf16.msra.mxu0 0
        %2117 = vmatprep.subr.bf16.mxu0 0
        %2118 = vmatpush1.bf16.msra.mxu0 0
        %2119 = vmatprep.subr.bf16.mxu0 0
        %2120 = vmatpush1.bf16.msra.mxu0 0
        %2121 = vmatprep.subr.bf16.mxu0 0
        %2122 = vmatpush1.bf16.msra.mxu0 0
        %2123 = vmatprep.subr.bf16.mxu0 0
        %2124 = vmatpush1.bf16.msra.mxu0 0
        %2125 = vmatprep.subr.bf16.mxu0 0
        %2126 = vmatpush1.bf16.msra.mxu0 0
        %2127 = vmatprep.subr.bf16.mxu0 0
        %2128 = vmatpush1.bf16.msra.mxu0 0
        %2129 = vmatprep.mubr.bf16.mxu0 0
        %2130 = vmatmul.mubr.bf16.gmra.mrb[0].mxu0 %v2050
        %v2131 = vpop.f32.mrb[0].mxu0
        %v2132 = vadd.f32 %v2035, %v2131
        %v2133 = vpop.f32.mrb[0].mxu0
        %v2134 = vpop.f32.mrb[0].mxu0
        %v2135 = vadd.f32 %v2035, %v2134
        %v2136 = vpop.f32.mrb[0].mxu0
        %2137 = vmatprep.mubr.bf16.mxu0 0
        %2138 = vmatmul.mubr.bf16.gmra.mrb[0].mxu0 %v2053
        %v2139 = vpop.f32.mrb[0].mxu0
        %v2140 = vadd.f32 %v2035, %v2139
        %v2141 = vpop.f32.mrb[0].mxu0
        %v2142 = vpop.f32.mrb[0].mxu0
        %v2143 = vadd.f32 %v2035, %v2142
        %v2144 = vpop.f32.mrb[0].mxu0
        %2145 = vmatprep.mubr.bf16.mxu0 0
        %2146 = vmatmul.mubr.bf16.gmra.mrb[0].mxu0 %v2056
        %v2147 = vpop.f32.mrb[0].mxu0
        %v2148 = vadd.f32 %v2035, %v2147
        %v2149 = vpop.f32.mrb[0].mxu0
        %v2150 = vpop.f32.mrb[0].mxu0
        %v2151 = vadd.f32 %v2035, %v2150
        %v2152 = vpop.f32.mrb[0].mxu0
        %2153 = vmatprep.mubr.bf16.mxu0 0
        %2154 = vmatmul.mubr.bf16.gmra.mrb[0].mxu0 %v2059
        %v2155 = vpop.f32.mrb[0].mxu0
        %v2156 = vadd.f32 %v2035, %v2155
        %v2157 = vpop.f32.mrb[0].mxu0
        %v2158 = vpop.f32.mrb[0].mxu0
        %v2159 = vadd.f32 %v2035, %v2158
        %v2160 = vpop.f32.mrb[0].mxu0
        %2161 = vmatprep.mubr.bf16.mxu0 0
        %2162 = vmatmul.mubr.bf16.gmra.mrb[0].mxu0 %v2062
        %v2163 = vpop.f32.mrb[0].mxu0
        %v2164 = vadd.f32 %v2035, %v2163
        %v2165 = vpop.f32.mrb[0].mxu0
        %v2166 = vpop.f32.mrb[0].mxu0
        %v2167 = vadd.f32 %v2035, %v2166
        %v2168 = vpop.f32.mrb[0].mxu0
        %2169 = vmatprep.mubr.bf16.mxu0 0
        %2170 = vmatmul.mubr.bf16.gmra.mrb[0].mxu0 %v2065
        %v2171 = vpop.f32.mrb[0].mxu0
        %v2172 = vadd.f32 %v2035, %v2171
        %v2173 = vpop.f32.mrb[0].mxu0
        %v2174 = vpop.f32.mrb[0].mxu0
        %v2175 = vadd.f32 %v2035, %v2174
        %v2176 = vpop.f32.mrb[0].mxu0
        %2177 = vmatprep.mubr.bf16.mxu0 0
        %2178 = vmatmul.mubr.bf16.gmra.mrb[0].mxu0 %v2068
        %v2179 = vpop.f32.mrb[0].mxu0
        %v2180 = vadd.f32 %v2035, %v2179
        %v2181 = vpop.f32.mrb[0].mxu0
        %v2182 = vpop.f32.mrb[0].mxu0
        %v2183 = vadd.f32 %v2035, %v2182
        %v2184 = vpop.f32.mrb[0].mxu0
        %2185 = vmatprep.mubr.bf16.mxu0 0
        %2186 = vmatmul.mubr.bf16.gmra.mrb[0].mxu0 %v2071
        %v2187 = vpop.f32.mrb[0].mxu0
        %v2188 = vadd.f32 %v2035, %v2187
        %v2189 = vpop.f32.mrb[0].mxu0
        %v2190 = vpop.f32.mrb[0].mxu0
        %v2191 = vadd.f32 %v2035, %v2190
        %v2192 = vpop.f32.mrb[0].mxu0
        %2193 = vmatprep.mubr.bf16.mxu0 0
        %2194 = vmatmul.mubr.bf16.gmra.mrb[0].mxu0 %v2074
        %v2195 = vpop.f32.mrb[0].mxu0
        %v2196 = vadd.f32 %v2035, %v2195
        %v2197 = vpop.f32.mrb[0].mxu0
        %v2198 = vpop.f32.mrb[0].mxu0
        %v2199 = vadd.f32 %v2035, %v2198
        %v2200 = vpop.f32.mrb[0].mxu0
        %2201 = vmatprep.mubr.bf16.mxu0 0
        %2202 = vmatmul.mubr.bf16.gmra.mrb[0].mxu0 %v2077
        %v2203 = vpop.f32.mrb[0].mxu0
        %v2204 = vadd.f32 %v2035, %v2203
        %v2205 = vpop.f32.mrb[0].mxu0
        %v2206 = vpop.f32.mrb[0].mxu0
        %v2207 = vadd.f32 %v2035, %v2206
        %v2208 = vpop.f32.mrb[0].mxu0
        %2209 = vmatprep.mubr.bf16.mxu0 0
        %2210 = vmatmul.mubr.bf16.gmra.mrb[0].mxu0 %v2080
        %v2211 = vpop.f32.mrb[0].mxu0
        %v2212 = vadd.f32 %v2035, %v2211
        %v2213 = vpop.f32.mrb[0].mxu0
        %v2214 = vpop.f32.mrb[0].mxu0
        %v2215 = vadd.f32 %v2035, %v2214
        %v2216 = vpop.f32.mrb[0].mxu0
        %2217 = vmatprep.mubr.bf16.mxu0 0
        %2218 = vmatmul.mubr.bf16.gmra.mrb[0].mxu0 %v2083
        %v2219 = vpop.f32.mrb[0].mxu0
        %v2220 = vadd.f32 %v2035, %v2219
        %v2221 = vpop.f32.mrb[0].mxu0
        %v2222 = vpop.f32.mrb[0].mxu0
        %v2223 = vadd.f32 %v2035, %v2222
        %v2224 = vpop.f32.mrb[0].mxu0
        %2225 = vmatprep.mubr.bf16.mxu0 0
        %2226 = vmatmul.mubr.bf16.gmra.mrb[0].mxu0 %v2086
        %v2227 = vpop.f32.mrb[0].mxu0
        %v2228 = vadd.f32 %v2035, %v2227
        %v2229 = vpop.f32.mrb[0].mxu0
        %v2230 = vpop.f32.mrb[0].mxu0
        %v2231 = vadd.f32 %v2035, %v2230
        %v2232 = vpop.f32.mrb[0].mxu0
        %2233 = vmatprep.mubr.bf16.mxu0 0
        %2234 = vmatmul.mubr.bf16.gmra.mrb[0].mxu0 %v2089
        %v2235 = vpop.f32.mrb[0].mxu0
        %v2236 = vadd.f32 %v2035, %v2235
        %v2237 = vpop.f32.mrb[0].mxu0
        %v2238 = vpop.f32.mrb[0].mxu0
        %v2239 = vadd.f32 %v2035, %v2238
        %v2240 = vpop.f32.mrb[0].mxu0
        %2241 = vmatprep.mubr.bf16.mxu0 0
        %2242 = vmatmul.mubr.bf16.gmra.mrb[0].mxu0 %v2092
        %v2243 = vpop.f32.mrb[0].mxu0
        %v2244 = vadd.f32 %v2035, %v2243
        %v2245 = vpop.f32.mrb[0].mxu0
        %v2246 = vpop.f32.mrb[0].mxu0
        %v2247 = vadd.f32 %v2035, %v2246
        %v2248 = vpop.f32.mrb[0].mxu0
        %2249 = vmatprep.mubr.bf16.mxu0 0
        %2250 = vmatmul.mubr.bf16.gmra.mrb[0].mxu0 %v2095
        %v2251 = vpop.f32.mrb[0].mxu0
        %v2252 = vadd.f32 %v2035, %v2251
        %v2253 = vpop.f32.mrb[0].mxu0
        %v2254 = vpop.f32.mrb[0].mxu0
        %v2255 = vadd.f32 %v2035, %v2254
        %v2256 = vpop.f32.mrb[0].mxu0
        %2257 = vdwg.mxu0
        %v2258 = vadd.f32 %v2132, %v298
        %v2259 = vadd.f32 %v2135, %v299
        %v2260 = vadd.f32 %v2140, %v300
        %v2261 = vadd.f32 %v2143, %v301
        %v2262 = vadd.f32 %v2148, %v302
        %v2263 = vadd.f32 %v2151, %v303
        %v2264 = vadd.f32 %v2156, %v304
        %v2265 = vadd.f32 %v2159, %v305
        %v2266 = vadd.f32 %v2164, %v306
        %v2267 = vadd.f32 %v2167, %v307
        %v2268 = vadd.f32 %v2172, %v308
        %v2269 = vadd.f32 %v2175, %v309
        %v2270 = vadd.f32 %v2180, %v310
        %v2271 = vadd.f32 %v2183, %v311
        %v2272 = vadd.f32 %v2188, %v312
        %v2273 = vadd.f32 %v2191, %v313
        %v2274 = vadd.f32 %v2196, %v314
        %v2275 = vadd.f32 %v2199, %v315
        %v2276 = vadd.f32 %v2204, %v316
        %v2277 = vadd.f32 %v2207, %v317
        %v2278 = vadd.f32 %v2212, %v318
        %v2279 = vadd.f32 %v2215, %v319
        %v2280 = vadd.f32 %v2220, %v320
        %v2281 = vadd.f32 %v2223, %v321
        %v2282 = vadd.f32 %v2228, %v322
        %v2283 = vadd.f32 %v2231, %v323
        %v2284 = vadd.f32 %v2236, %v324
        %v2285 = vadd.f32 %v2239, %v325
        %v2286 = vadd.f32 %v2244, %v326
        %v2287 = vadd.f32 %v2247, %v327
        %v2288 = vadd.f32 %v2252, %v328
        %v2289 = vadd.f32 %v2255, %v329
        %v2290 = vmax.f32 %v2258, 0.0
        %v2291 = vmax.f32 %v2259, 0.0
        %v2292 = vmax.f32 %v2260, 0.0
        %v2293 = vmax.f32 %v2261, 0.0
        %v2294 = vmax.f32 %v2262, 0.0
        %v2295 = vmax.f32 %v2263, 0.0
        %v2296 = vmax.f32 %v2264, 0.0
        %v2297 = vmax.f32 %v2265, 0.0
        %v2298 = vmax.f32 %v2266, 0.0
        %v2299 = vmax.f32 %v2267, 0.0
        %v2300 = vmax.f32 %v2268, 0.0
        %v2301 = vmax.f32 %v2269, 0.0
        %v2302 = vmax.f32 %v2270, 0.0
        %v2303 = vmax.f32 %v2271, 0.0
        %v2304 = vmax.f32 %v2272, 0.0
        %v2305 = vmax.f32 %v2273, 0.0
        %v2306 = vmax.f32 %v2274, 0.0
        %v2307 = vmax.f32 %v2275, 0.0
        %v2308 = vmax.f32 %v2276, 0.0
        %v2309 = vmax.f32 %v2277, 0.0
        %v2310 = vmax.f32 %v2278, 0.0
        %v2311 = vmax.f32 %v2279, 0.0
        %v2312 = vmax.f32 %v2280, 0.0
        %v2313 = vmax.f32 %v2281, 0.0
        %v2314 = vmax.f32 %v2282, 0.0
        %v2315 = vmax.f32 %v2283, 0.0
        %v2316 = vmax.f32 %v2284, 0.0
        %v2317 = vmax.f32 %v2285, 0.0
        %v2318 = vmax.f32 %v2286, 0.0
        %v2319 = vmax.f32 %v2287, 0.0
        %v2320 = vmax.f32 %v2288, 0.0
        %v2321 = vmax.f32 %v2289, 0.0
        %2322 = vst [vmem:[%s296] sm:$0xff] %v2290
        %2323 = vst [vmem:[%s296 + $0x8] sm:$0xff] %v2291
        %2324 = vst [vmem:[%s296 + $0x10] sm:$0xff] %v2292
        %2325 = vst [vmem:[%s296 + $0x18] sm:$0xff] %v2293
        %2326 = vst [vmem:[%s296 + $0x20] sm:$0xff] %v2294
        %2327 = vst [vmem:[%s296 + $0x28] sm:$0xff] %v2295
        %2328 = vst [vmem:[%s296 + $0x30] sm:$0xff] %v2296
        %2329 = vst [vmem:[%s296 + $0x38] sm:$0xff] %v2297
        %2330 = vst [vmem:[%s296 + $0x40] sm:$0xff] %v2298
        %2331 = vst [vmem:[%s296 + $0x48] sm:$0xff] %v2299
        %2332 = vst [vmem:[%s296 + $0x50] sm:$0xff] %v2300
        %2333 = vst [vmem:[%s296 + $0x58] sm:$0xff] %v2301
        %2334 = vst [vmem:[%s296 + $0x60] sm:$0xff] %v2302
        %2335 = vst [vmem:[%s296 + $0x68] sm:$0xff] %v2303
        %2336 = vst [vmem:[%s296 + $0x70] sm:$0xff] %v2304
        %2337 = vst [vmem:[%s296 + $0x78] sm:$0xff] %v2305
        %2338 = vst [vmem:[%s296 + $0x80] sm:$0xff] %v2306
        %2339 = vst [vmem:[%s296 + $0x88] sm:$0xff] %v2307
        %2340 = vst [vmem:[%s296 + $0x90] sm:$0xff] %v2308
        %2341 = vst [vmem:[%s296 + $0x98] sm:$0xff] %v2309
        %2342 = vst [vmem:[%s296 + $0xa0] sm:$0xff] %v2310
        %2343 = vst [vmem:[%s296 + $0xa8] sm:$0xff] %v2311
        %2344 = vst [vmem:[%s296 + $0xb0] sm:$0xff] %v2312
        %2345 = vst [vmem:[%s296 + $0xb8] sm:$0xff] %v2313
        %2346 = vst [vmem:[%s296 + $0xc0] sm:$0xff] %v2314
        %2347 = vst [vmem:[%s296 + $0xc8] sm:$0xff] %v2315
        %2348 = vst [vmem:[%s296 + $0xd0] sm:$0xff] %v2316
        %2349 = vst [vmem:[%s296 + $0xd8] sm:$0xff] %v2317
        %2350 = vst [vmem:[%s296 + $0xe0] sm:$0xff] %v2318
        %2351 = vst [vmem:[%s296 + $0xe8] sm:$0xff] %v2319
        %2352 = vst [vmem:[%s296 + $0xf0] sm:$0xff] %v2320
        %2353 = vst [vmem:[%s296 + $0xf8] sm:$0xff] %v2321
        %s2354 = sand.u32 %s184, 1
        %s2355 = scalar_lea.sflag [#allocation4], %s2354
        %s2356 = sand.u32 %s184, 1
        %s2357 = smul.addr %s2356, 256
        %s2358 = scalar_lea.vmem [#allocation5], %s2357
        // Predicated region
        $region53: #{tpu_custom_call.1} parent=47 // pred_check
          %p2359 = pneg %p194
        $region54: #{tpu_custom_call.1} parent=47 // pred_check_branch
          %2361 = sbr.rel (%p2359) target = $region56
        $region55: #{tpu_custom_call.1} parent=47 // pred_region
          %s2363 = ssub.s32 4096, 4096
          %2364 = vsyncadd %s2355, %s2363
          %s2365 = smul.addr %s24, 32
          %s2366 = smul.addr %s2365, 128
          %s2367 = scalar_lea.hbm %s7, %s2366
          %s2368 = sshll.u32 %s2358, 4
          %s2369 = int_to_ptr.vmem [resolvable:$true] %s2368
          %2374 = dma.vmem_to_hbm [thread:$0]  %s2369, 4096, %s2367, %s2355, 128, 128, 8
        $region56: #{tpu_custom_call.1} parent=47 // pred_fallthru
          _
      $region48: #{tpu_custom_call.1} parent=5 // pred_fallthru
        _
      %p2375 = scmp.le.s32.totalorder 2, %s19
      // Predicated region
      $region57: #{tpu_custom_call.1} parent=5 // pred_check
        %p2376 = pneg %p2375
      $region58: #{tpu_custom_call.1} parent=5 // pred_check_branch
        %2378 = sbr.rel (%p2376) target = $region60
      $region59: #{tpu_custom_call.1} parent=5 // pred_region
        %s2379 = ssub.s32 %s19, 2
        // Predicated region
        $region61: #{tpu_custom_call.1} parent=59 // pred_check
          %p2380 = pneg %p200
        $region62: #{tpu_custom_call.1} parent=59 // pred_check_branch
          %2382 = sbr.rel (%p2380) target = $region64
        $region63: #{tpu_custom_call.1} parent=59 // pred_region
          %s2383 = sand.u32 %s185, 1
          %s2384 = scalar_lea.sflag [#allocation4], %s2383
          %s2385 = sand.u32 %s185, 1
          %s2386 = smul.addr %s2385, 256
          %s2387 = scalar_lea.vmem [#allocation5], %s2386
          %2388 = dma.done %s2384, 4096
        $region64: #{tpu_custom_call.1} parent=59 // pred_fallthru
          _
      $region60: #{tpu_custom_call.1} parent=5 // pred_fallthru
        _
    $region6: #{tpu_custom_call.1} parent=1 // loop_footer
      %s23 = sadd.s32 1, %s19
    $region7: #{tpu_custom_call.1} parent=1 // loop_footer_branch
      %18 = sbr.rel target = $region3
    $region8: #{tpu_custom_call.1} parent=1 // loop_exit
      _
    %2389 = vsyncpa [#allocation3], 1
    %s2390 = scalar_lea.sflag [#allocation3], 1
    %2391 = vsyncpa %s2390, 1
    %2392 = vsyncpa [#allocation4], 1
    %s2393 = scalar_lea.sflag [#allocation4], 1
    %2394 = vsyncpa %s2393, 1

</llo_original>
